<compile_context>
chip_gen: v6e
topology: v6e:2x2x1
jax: 0.10.0
libtpu: 0.0.40
codegen_flags: <defaults>
</compile_context>

<pallas_src>
import functools

import numpy as np
import jax
import jax.numpy as jnp
from jax import lax
from jax.experimental import pallas as pl
from jax.experimental.pallas import tpu as pltpu


_LANE = 128
_SUBLANE = 8


def _round_up(x, m):
    return ((x + m - 1) // m) * m


def _vmem_cap_bytes():
    """Physical VMEM capacity (v5e/v6e: 128 MiB, v7x: 64 MiB); conservative fallback."""
    try:
        cap = int(getattr(pltpu.get_tpu_info(), "vmem_capacity_bytes", 0))
        if cap > 0:
            return cap
    except Exception:
        pass
    return 64 * 1024 * 1024


def _estimate_vmem_bytes(tb, n_total, tk, h_pad, c_pad, n_sup_pad, n_tgt_pad):
    x_blk = tb * n_total * tk * 2                        # bf16 input block
    w_enc = tk * h_pad * 2                               # bf16 encoder weight block
    w_cls = h_pad * c_pad * 2 + (h_pad + c_pad) * 4      # classifier weight + biases
    labels = tb * (n_sup_pad + n_tgt_pad) * 4 * _LANE    # i32 labels, lane-padded
    outs = tb * (n_total + n_tgt_pad) * c_pad * 2 + tb * _LANE * 4
    acc = tb * n_total * h_pad * 4                       # f32 accumulator scratch
    return 2 * (x_blk + w_enc + w_cls + labels + outs) + acc   # 2x: double-buffering


# ----------------------------------------------------------------------------
# Fused kernel: task-blocked encoder (K-tiled) + classifier + prototypes +
# cosine matching + CE loss.  Grid = (task_blocks, K_steps).
# ----------------------------------------------------------------------------

def _cls_task_kernel(x_ref, ysup_ref, ytgt_ref,
                     w_enc_ref, b_enc_ref, w_cls_ref, b_cls_ref,
                     logits_ref, match_ref, loss_ref,
                     acc_ref,
                     *, n_sup_pad, n_tgt_real, n_classes, divisor):
    k = pl.program_id(1)

    @pl.when(k == 0)
    def _():
        acc_ref[...] = jnp.zeros_like(acc_ref)

    # Encoder partial sum over the feature (K) dim.  All Tb tasks of this block
    # share ONE MXU pass with M = Tb*n_total rows (bf16 operands, f32 accumulate).
    acc_ref[...] += jnp.dot(x_ref[...], w_enc_ref[...],
                            preferred_element_type=jnp.float32)

    @pl.when(k == pl.num_programs(1) - 1)
    def _():
        tb, n_total, c_pad = logits_ref.shape
        n_tgt_pad = n_total - n_sup_pad
        inv_div = 1.0 / divisor
        eps2 = 1e-16  # torch-style 1e-8 norm clamp, squared

        # Shared finalize: bias + ReLU, then one batched classifier matmul for
        # the whole task block (keeps the MXU M-dim large).
        enc_all = jnp.maximum(acc_ref[...] + b_enc_ref[...], 0.0)        # (Tb*Ntot, Hpad) f32
        logits_all = jnp.dot(enc_all.astype(jnp.bfloat16), w_cls_ref[...],
                             preferred_element_type=jnp.float32) + b_cls_ref[...]

        # Loop-invariant iotas, hoisted out of the per-task loop.
        sup_col = lax.broadcasted_iota(jnp.int32, (n_sup_pad, c_pad), 1)
        tgt_col = lax.broadcasted_iota(jnp.int32, (n_tgt_pad, c_pad), 1)
        valid_c = tgt_col < n_classes

        # Small per-task epilogue (prototypes, cosine match, CE "memory" loss),
        # one task at a time so live f32 intermediates stay within vreg budget.
        for t in range(tb):
            base = t * n_total
            enc = enc_all[base:base + n_total]                           # 8-aligned slice
            logits = logits_all[base:base + n_total]
            logits_ref[t] = logits.astype(logits_ref.dtype)              # lane-dense bf16 store

            sup_enc = enc[:n_sup_pad]                                    # (Nsup, Hpad)
            tgt_enc = enc[n_sup_pad:]                                    # (Ntgt, Hpad)
            tgt_logits = logits[n_sup_pad:]                              # (Ntgt, Cpad) f32

            # Per-class prototypes directly in (Hpad, Cpad) layout so the cosine
            # matmul below is a plain (M,K)@(K,N) with no transposed RHS.
            # Padded support rows / padded tasks carry label -1 -> one-hot 0.
            onehot_sup = (sup_col == ysup_ref[t]).astype(jnp.float32)    # (Nsup, Cpad)
            proto_t = jnp.dot(jnp.transpose(sup_enc), onehot_sup,
                              preferred_element_type=jnp.float32) * inv_div   # (Hpad, Cpad)

            # Cosine matching: rsqrt-normalized prototypes (EUP); target norm is
            # applied after the matmul so it scales (Ntgt, Cpad), not (Ntgt, Hpad).
            p_rnorm = lax.rsqrt(jnp.maximum(
                jnp.sum(proto_t * proto_t, axis=0, keepdims=True), eps2))
            t_rnorm = lax.rsqrt(jnp.maximum(
                jnp.sum(tgt_enc * tgt_enc, axis=-1, keepdims=True), eps2))
            sims = jnp.dot(tgt_enc, proto_t * p_rnorm,
                           preferred_element_type=jnp.float32) * t_rnorm
            match_ref[t] = sims.astype(match_ref.dtype)

            # Target cross-entropy (stand-in for the LTM "memory" loss), masked to
            # real classes; padded target rows carry label -1 -> zero contribution.
            z = jnp.where(valid_c, tgt_logits, jnp.float32(-1e30))
            m = jnp.max(z, axis=-1, keepdims=True)
            e = jnp.where(valid_c, jnp.exp(z - m), 0.0)
            lse = jnp.log(jnp.sum(e, axis=-1, keepdims=True)) + m
            onehot_tgt = (tgt_col == ytgt_ref[t]).astype(jnp.float32)
            nll = onehot_tgt * (lse - z)
            loss_11 = jnp.sum(jnp.sum(nll, axis=0, keepdims=True), axis=1, keepdims=True)
            # Lane-dense scalar writeback; wrapper reads [t, 0, 0].
            loss_ref[t] = jnp.broadcast_to(loss_11 * (1.0 / n_tgt_real), (1, _LANE))


# ----------------------------------------------------------------------------
# pallas_call wrapper
# ----------------------------------------------------------------------------

def _fused_forward_pallas(x_all, y_sup, y_tgt, w_enc, b_enc, w_cls, b_cls,
                          *, tb, n_sup_pad, n_tgt_pad, n_classes, n_tgt_real,
                          divisor, tk, vmem_limit_bytes):
    rows, f_pad = x_all.shape
    n_total = n_sup_pad + n_tgt_pad
    t_pad = rows // n_total
    h_pad = w_enc.shape[1]
    c_pad = w_cls.shape[1]
    num_k = f_pad // tk
    num_blocks = t_pad // tb

    kernel = functools.partial(
        _cls_task_kernel,
        n_sup_pad=n_sup_pad, n_tgt_real=float(n_tgt_real),
        n_classes=n_classes, divisor=float(divisor))

    if num_k == 1:
        # w_enc fully VMEM-resident: streamed from HBM exactly once.
        w_enc_spec = pl.BlockSpec((f_pad, h_pad), lambda t, k: (0, 0))
    else:
        # K-tiled: streamed once per task *block* (divided by Tb vs per task).
        w_enc_spec = pl.BlockSpec((tk, h_pad), lambda t, k: (k, 0))

    grid_spec = pltpu.PrefetchScalarGridSpec(
        num_scalar_prefetch=0,
        grid=(num_blocks, num_k),
        in_specs=[
            pl.BlockSpec((tb * n_total, tk), lambda t, k: (t, k)),       # x (bf16), flat rows
            pl.BlockSpec((tb, n_sup_pad, 1), lambda t, k: (t, 0, 0)),    # y_sup (i32)
            pl.BlockSpec((tb, n_tgt_pad, 1), lambda t, k: (t, 0, 0)),    # y_tgt (i32)
            w_enc_spec,                                                  # w_enc (bf16)
            pl.BlockSpec((1, h_pad), lambda t, k: (0, 0)),               # b_enc (f32), resident
            pl.BlockSpec((h_pad, c_pad), lambda t, k: (0, 0)),           # w_cls (bf16), resident
            pl.BlockSpec((1, c_pad), lambda t, k: (0, 0)),               # b_cls (f32), resident
        ],
        out_specs=(
            pl.BlockSpec((tb, n_total, c_pad), lambda t, k: (t, 0, 0)),    # logits (sup+tgt)
            pl.BlockSpec((tb, n_tgt_pad, c_pad), lambda t, k: (t, 0, 0)),  # cosine match
            pl.BlockSpec((tb, 1, _LANE), lambda t, k: (t, 0, 0)),          # per-task loss
        ),
        scratch_shapes=[pltpu.VMEM((tb * n_total, h_pad), jnp.float32)],
    )

    return pl.pallas_call(
        kernel,
        grid_spec=grid_spec,
        out_shape=(
            jax.ShapeDtypeStruct((t_pad, n_total, c_pad), jnp.bfloat16),
            jax.ShapeDtypeStruct((t_pad, n_tgt_pad, c_pad), jnp.bfloat16),
            jax.ShapeDtypeStruct((t_pad, 1, _LANE), jnp.float32),
        ),
        compiler_params=pltpu.CompilerParams(
            dimension_semantics=("parallel", "arbitrary"),
            vmem_limit_bytes=vmem_limit_bytes,
        ),
    )(x_all, y_sup, y_tgt, w_enc, b_enc, w_cls, b_cls)


# ----------------------------------------------------------------------------
# Forward pass (single jitted pipeline, no Python task loop)
# ----------------------------------------------------------------------------

@functools.partial(jax.jit, static_argnames=("n_classes", "divisor", "tk"))
def _cls_forward(x_support_set, x_target_set, y_support_set, y_target_set,
                 w_enc, b_enc, w_cls, b_cls, *, n_classes, divisor, tk):
    num_tasks = x_support_set.shape[0]
    c, h, w = x_target_set.shape[-3:]
    feat = c * h * w
    f_pad, h_pad = w_enc.shape
    c_pad = w_cls.shape[1]

    # Cast straight to bf16 (MXU operand dtype) -- no f32 staging round trip.
    x_sup = x_support_set.reshape(num_tasks, -1, feat).astype(jnp.bfloat16)
    x_tgt = x_target_set.reshape(num_tasks, -1, feat).astype(jnp.bfloat16)
    y_sup = y_support_set.reshape(num_tasks, -1).astype(jnp.int32)
    y_tgt = y_target_set.reshape(num_tasks, -1).astype(jnp.int32)
    n_sup, n_tgt = x_sup.shape[1], x_tgt.shape[1]
    n_sup_pad = _round_up(n_sup, _SUBLANE)
    n_tgt_pad = _round_up(n_tgt, _SUBLANE)
    n_total = n_sup_pad + n_tgt_pad

    # Task blocking: Tb tasks share one grid step so each encoder MXU pass sees
    # M = Tb*n_total rows (target >= 256), bounded by a per-chip VMEM budget.
    vmem_cap = _vmem_cap_bytes()
    tb = max(1, min(num_tasks, -(-256 // n_total)))
    while tb > 1 and _estimate_vmem_bytes(tb, n_total, tk, h_pad, c_pad,
                                          n_sup_pad, n_tgt_pad) > int(0.6 * vmem_cap):
        tb -= 1
    t_pad = _round_up(num_tasks, tb)
    vmem_limit = int(min(
        max(2 * _estimate_vmem_bytes(tb, n_total, tk, h_pad, c_pad,
                                     n_sup_pad, n_tgt_pad), 32 * 1024 * 1024),
        int(0.9 * vmem_cap)))

    def _pad_rows(xa, rows):
        return jnp.pad(xa, ((0, 0), (0, rows - xa.shape[1]), (0, f_pad - feat)))

    # (T_pad * n_total, f_pad): tasks contiguous along rows -> one flat 2-D MXU operand.
    x_task = jnp.concatenate(
        [_pad_rows(x_sup, n_sup_pad), _pad_rows(x_tgt, n_tgt_pad)], axis=1)
    x_task = jnp.pad(x_task, ((0, t_pad - num_tasks), (0, 0), (0, 0)))
    x_all = x_task.reshape(t_pad * n_total, f_pad)

    # Labels column-oriented (N, 1) so the in-kernel one-hot needs no transpose;
    # padded rows / padded tasks carry label -1 and never match the class iota.
    y_sup_in = jnp.pad(y_sup, ((0, t_pad - num_tasks), (0, n_sup_pad - n_sup)),
                       constant_values=-1)[:, :, None]
    y_tgt_in = jnp.pad(y_tgt, ((0, t_pad - num_tasks), (0, n_tgt_pad - n_tgt)),
                       constant_values=-1)[:, :, None]

    logits_p, match_p, loss_p = _fused_forward_pallas(
        x_all, y_sup_in, y_tgt_in, w_enc, b_enc, w_cls, b_cls,
        tb=tb, n_sup_pad=n_sup_pad, n_tgt_pad=n_tgt_pad, n_classes=n_classes,
        n_tgt_real=n_tgt, divisor=divisor, tk=tk, vmem_limit_bytes=vmem_limit)

    sup_logits = logits_p[:num_tasks, :n_sup, :n_classes].astype(jnp.float32)
    tgt_logits = logits_p[:num_tasks, n_sup_pad:n_sup_pad + n_tgt,
                          :n_classes].astype(jnp.float32)
    match = match_p[:num_tasks, :n_tgt, :n_classes].astype(jnp.float32)
    per_task_loss = loss_p[:num_tasks, 0, 0]

    # argmax(softmax(x, axis=-1)) == argmax(x, axis=-1): softmax dropped.
    matching_acc = jnp.mean(
        (jnp.argmax(match, axis=-1) == y_tgt).astype(jnp.float32))
    # Preserve the original softmax(dim=0)-then-argmax(dim=1) support quirk.
    support_acc = jnp.mean(
        (jnp.argmax(jax.nn.softmax(sup_logits, axis=1), axis=-1) == y_sup)
        .astype(jnp.float32))
    target_acc = jnp.mean(
        (jnp.argmax(tgt_logits, axis=-1) == y_tgt).astype(jnp.float32))

    losses = {
        'loss': jnp.mean(per_task_loss),
        'accuracy': target_acc,
        'support_ltm_accuracy': support_acc,
        'matching_ltm_accuracy': matching_acc,
    }
    return losses, tgt_logits


class CLSFewShotClassifierPallas:
    def __init__(self, *, image_channels, image_height, image_width,
                 num_classes_per_set, num_samples_per_support_class,
                 hidden_dim, batch_size, seed=0, k_block=512,
                 max_resident_w_enc_bytes=8 * 1024 * 1024):
        self.num_classes_per_set = num_classes_per_set
        self.num_samples_per_support_class = num_samples_per_support_class
        self.batch_size = batch_size
        # overwrite_classes_in_each_task=True -> output_units = num_classes_per_set
        self.output_units = int(num_classes_per_set)
        self.hidden_dim = hidden_dim

        feat = image_channels * image_height * image_width
        f_pad0 = _round_up(feat, _LANE)
        h_pad = _round_up(hidden_dim, _LANE)
        c_pad = _round_up(self.output_units, _LANE)

        if f_pad0 * h_pad * 2 <= max_resident_w_enc_bytes:
            # w_enc fits VMEM: single K step, fully resident encoder weight.
            tk = f_pad = f_pad0
        else:
            # K-tiled: tk a multiple of 256 when possible (full-depth MXU passes).
            step = 256 if k_block >= 256 else _LANE
            tk = max(step, (min(k_block, f_pad0) // step) * step)
            f_pad = _round_up(f_pad0, tk)
        self.tk = tk

        k1, k2, k3, k4 = jax.random.split(jax.random.PRNGKey(seed), 4)
        w_enc = (jax.random.normal(k1, (feat, hidden_dim), jnp.float32)
                 / jnp.sqrt(float(feat)))
        b_enc = jax.random.normal(k2, (1, hidden_dim), jnp.float32) * 0.01
        w_cls = (jax.random.normal(k3, (hidden_dim, self.output_units), jnp.float32)
                 / jnp.sqrt(float(hidden_dim)))
        b_cls = jax.random.normal(k4, (1, self.output_units), jnp.float32) * 0.01

        # Zero-pad to lane/MXU-friendly shapes; bf16 weights feed the MXU at native rate.
        self.w_enc = jnp.pad(w_enc, ((0, f_pad - feat),
                                     (0, h_pad - hidden_dim))).astype(jnp.bfloat16)
        self.b_enc = jnp.pad(b_enc, ((0, 0), (0, h_pad - hidden_dim)))
        self.w_cls = jnp.pad(w_cls, ((0, h_pad - hidden_dim),
                                     (0, c_pad - self.output_units))).astype(jnp.bfloat16)
        self.b_cls = jnp.pad(b_cls, ((0, 0), (0, c_pad - self.output_units)))
        # TODO(synk): STM study/consolidation loop, replay buffer, and LTM optimizer
        # updates from the original CLS model are stateful training procedures with no
        # provided definition; only the evaluation-time numeric path is implemented.

    def forward(self, data_batch, training_phase=False):
        del training_phase
        x_support_set, x_target_set, y_support_set, y_target_set = data_batch
        divisor = int(self.num_samples_per_support_class * self.num_classes_per_set)
        losses, tgt_logits = _cls_forward(
            x_support_set, x_target_set, y_support_set, y_target_set,
            self.w_enc, self.b_enc, self.w_cls, self.b_cls,
            n_classes=self.output_units, divisor=divisor, tk=self.tk)
        # Single host transfer instead of num_tasks tiny device slice dispatches.
        preds_np = np.asarray(jax.device_get(tgt_logits), dtype=np.float32)
        per_task_preds = [preds_np[t] for t in range(preds_np.shape[0])]
        return losses, per_task_preds


# ----------------------------------------------------------------------------
# Demo
# ----------------------------------------------------------------------------

if __name__ == "__main__":
    key = jax.random.PRNGKey(0)

    num_tasks = 2
    num_classes_per_set = 4
    num_samples_per_support_class = 2
    C, H, W = 4, 8, 8
    hidden_dim = 32
    n_support = num_classes_per_set * num_samples_per_support_class  # 8
    n_target = 8

    k_xs, k_xt, k_yt = jax.random.split(key, 3)
    x_support = jax.random.normal(k_xs, (num_tasks, n_support, C, H, W), jnp.float32)
    x_target = jax.random.normal(k_xt, (num_tasks, n_target, C, H, W), jnp.float32)
    y_support = jnp.tile(
        jnp.repeat(jnp.arange(num_classes_per_set, dtype=jnp.int32),
                   num_samples_per_support_class)[None, :],
        (num_tasks, 1))
    y_target = jax.random.randint(k_yt, (num_tasks, n_target), 0,
                                  num_classes_per_set, jnp.int32)
    batch = (x_support, x_target, y_support, y_target)

    # Path 1: w_enc fully VMEM-resident (single K step).
    model_resident = CLSFewShotClassifierPallas(
        image_channels=C, image_height=H, image_width=W,
        num_classes_per_set=num_classes_per_set,
        num_samples_per_support_class=num_samples_per_support_class,
        hidden_dim=hidden_dim, batch_size=1, seed=0)
    losses_r, preds_r = model_resident.forward(batch)
    losses_r = jax.tree_util.tree_map(jax.block_until_ready, losses_r)

    # Path 2: forced K-tiling (feat=256 -> 2 K steps) to exercise the accumulator path.
    model_tiled = CLSFewShotClassifierPallas(
        image_channels=C, image_height=H, image_width=W,
        num_classes_per_set=num_classes_per_set,
        num_samples_per_support_class=num_samples_per_support_class,
        hidden_dim=hidden_dim, batch_size=1, seed=0,
        k_block=128, max_resident_w_enc_bytes=0)
    losses_t, preds_t = model_tiled.forward(batch)
    losses_t = jax.tree_util.tree_map(jax.block_until_ready, losses_t)

    assert all(bool(jnp.isfinite(v)) for v in losses_r.values())
    assert all(bool(jnp.isfinite(v)) for v in losses_t.values())
    assert preds_r[0].shape == (n_target, num_classes_per_set)
    assert len(preds_r) == num_tasks
    # Resident and K-tiled paths share the same weights -> same results (bf16 tol).
    assert np.allclose(float(losses_r['loss']), float(losses_t['loss']),
                       rtol=5e-2, atol=5e-2)
    assert np.allclose(np.stack(preds_r), np.stack(preds_t), rtol=5e-2, atol=5e-2)

    print("KERNEL_OK")
</pallas_src>

<mosaic_0001>
module attributes {stable_mosaic.version = 11 : i64} {
  func.func @_cls_task_kernel(%arg0: i32, %arg1: i32, %arg2: memref<32x256xbf16, #tpu.memory_space<vmem>>, %arg3: memref<2x8x1xi32, #tpu.memory_space<vmem>>, %arg4: memref<2x8x1xi32, #tpu.memory_space<vmem>>, %arg5: memref<256x128xbf16, #tpu.memory_space<vmem>>, %arg6: memref<1x128xf32, #tpu.memory_space<vmem>>, %arg7: memref<128x128xbf16, #tpu.memory_space<vmem>>, %arg8: memref<1x128xf32, #tpu.memory_space<vmem>>, %arg9: memref<2x16x128xbf16, #tpu.memory_space<vmem>>, %arg10: memref<2x8x128xbf16, #tpu.memory_space<vmem>>, %arg11: memref<2x1x128xf32, #tpu.memory_space<vmem>>, %arg12: memref<32x128xf32, #tpu.memory_space<vmem>>) attributes {dimension_semantics = [#tpu.dimension_semantics<parallel>, #tpu.dimension_semantics<arbitrary>], iteration_bounds = array<i64: 1, 1>, scalar_prefetch = 0 : i64, scratch_operands = 1 : i64, tpu.core_type = #tpu.core_type<tc>, window_params = [{transform_indices = @transform_0, window_bounds = array<i64: 32, 256>}, {transform_indices = @transform_1, window_bounds = array<i64: 2, 8, 1>}, {transform_indices = @transform_2, window_bounds = array<i64: 2, 8, 1>}, {pipeline_mode = #tpu.pipeline_mode<synchronous>, transform_indices = @transform_3, window_bounds = array<i64: 256, 128>}, {pipeline_mode = #tpu.pipeline_mode<synchronous>, transform_indices = @transform_4, window_bounds = array<i64: 1, 128>}, {pipeline_mode = #tpu.pipeline_mode<synchronous>, transform_indices = @transform_5, window_bounds = array<i64: 128, 128>}, {pipeline_mode = #tpu.pipeline_mode<synchronous>, transform_indices = @transform_6, window_bounds = array<i64: 1, 128>}, {transform_indices = @transform_7, window_bounds = array<i64: 2, 16, 128>}, {transform_indices = @transform_8, window_bounds = array<i64: 2, 8, 128>}, {transform_indices = @transform_9, window_bounds = array<i64: 2, 1, 128>}]} {
    %c0_i32 = arith.constant 0 : i32
    %0 = arith.cmpi eq, %arg1, %c0_i32 : i32
    %1 = arith.extui %0 : i1 to i32
    %c0_i32_0 = arith.constant 0 : i32
    %2 = arith.cmpi ne, %1, %c0_i32_0 : i32
    scf.if %2 {
      %cst_10 = arith.constant 0.000000e+00 : f32
      %12 = vector.broadcast %cst_10 : f32 to vector<32x128xf32>
      %c0_11 = arith.constant 0 : index
      %c0_12 = arith.constant 0 : index
      %13 = vector.load %arg12[%c0_11, %c0_12] : memref<32x128xf32, #tpu.memory_space<vmem>>, vector<32x128xf32>
      tpu.vector_store %arg12[%c0_11, %c0_12], %12 {strides = array<i32>} : memref<32x128xf32, #tpu.memory_space<vmem>>, vector<32x128xf32>,
    } else {
    }
    %c0 = arith.constant 0 : index
    %c0_1 = arith.constant 0 : index
    %3 = vector.load %arg12[%c0, %c0_1] : memref<32x128xf32, #tpu.memory_space<vmem>>, vector<32x128xf32>
    %c0_2 = arith.constant 0 : index
    %c0_3 = arith.constant 0 : index
    %4 = vector.load %arg2[%c0_2, %c0_3] : memref<32x256xbf16, #tpu.memory_space<vmem>>, vector<32x256xbf16>
    %c0_4 = arith.constant 0 : index
    %c0_5 = arith.constant 0 : index
    %5 = vector.load %arg5[%c0_4, %c0_5] : memref<256x128xbf16, #tpu.memory_space<vmem>>, vector<256x128xbf16>
    %cst = arith.constant dense<0.000000e+00> : vector<32x128xf32>
    %6 = tpu.matmul %4, %5, %cst {dimension_numbers = #tpu.dot_dimension_numbers<[1], [0], [0], [1], [0, 0, 1, 1], [], []>} : vector<32x256xbf16>, vector<256x128xbf16>, vector<32x128xf32> -> vector<32x128xf32>
    %7 = arith.addf %3, %6 : vector<32x128xf32>
    %c0_6 = arith.constant 0 : index
    %c0_7 = arith.constant 0 : index
    %8 = vector.load %arg12[%c0_6, %c0_7] : memref<32x128xf32, #tpu.memory_space<vmem>>, vector<32x128xf32>
    tpu.vector_store %arg12[%c0_6, %c0_7], %7 {strides = array<i32>} : memref<32x128xf32, #tpu.memory_space<vmem>>, vector<32x128xf32>,
    %c0_i32_8 = arith.constant 0 : i32
    %9 = arith.cmpi eq, %arg1, %c0_i32_8 : i32
    %10 = arith.extui %9 : i1 to i32
    %c0_i32_9 = arith.constant 0 : i32
    %11 = arith.cmpi ne, %10, %c0_i32_9 : i32
    scf.if %11 {
      %c0_10 = arith.constant 0 : index
      %c0_11 = arith.constant 0 : index
      %12 = vector.load %arg12[%c0_10, %c0_11] : memref<32x128xf32, #tpu.memory_space<vmem>>, vector<32x128xf32>
      %c0_12 = arith.constant 0 : index
      %c0_13 = arith.constant 0 : index
      %13 = vector.load %arg6[%c0_12, %c0_13] : memref<1x128xf32, #tpu.memory_space<vmem>>, vector<1x128xf32>
      %14 = vector.broadcast %13 : vector<1x128xf32> to vector<32x128xf32>
      %15 = arith.addf %12, %14 : vector<32x128xf32>
      %cst_14 = arith.constant 0.000000e+00 : f32
      %16 = vector.broadcast %cst_14 : f32 to vector<32x128xf32>
      %17 = arith.maximumf %15, %16 : vector<32x128xf32>
      %18 = arith.truncf %17 : vector<32x128xf32> to vector<32x128xbf16>
      %c0_15 = arith.constant 0 : index
      %c0_16 = arith.constant 0 : index
      %19 = vector.load %arg7[%c0_15, %c0_16] : memref<128x128xbf16, #tpu.memory_space<vmem>>, vector<128x128xbf16>
      %cst_17 = arith.constant dense<0.000000e+00> : vector<32x128xf32>
      %20 = tpu.matmul %18, %19, %cst_17 {dimension_numbers = #tpu.dot_dimension_numbers<[1], [0], [0], [1], [0, 0, 1, 1], [], []>} : vector<32x128xbf16>, vector<128x128xbf16>, vector<32x128xf32> -> vector<32x128xf32>
      %c0_18 = arith.constant 0 : index
      %c0_19 = arith.constant 0 : index
      %21 = vector.load %arg8[%c0_18, %c0_19] : memref<1x128xf32, #tpu.memory_space<vmem>>, vector<1x128xf32>
      %22 = vector.broadcast %21 : vector<1x128xf32> to vector<32x128xf32>
      %23 = arith.addf %20, %22 : vector<32x128xf32>
      %24 = tpu.iota {dimensions = array<i32: 1>} : vector<8x128xi32>
      %25 = tpu.iota {dimensions = array<i32: 1>} : vector<8x128xi32>
      %c4_i32 = arith.constant 4 : i32
      %26 = vector.broadcast %c4_i32 : i32 to vector<8x128xi32>
      %27 = arith.cmpi slt, %25, %26 : vector<8x128xi32>
      %28 = vector.extract_strided_slice %17 {offsets = [0, 0], sizes = [16, 128], strides = [1, 1]} : vector<32x128xf32> to vector<16x128xf32>
      %29 = vector.extract_strided_slice %23 {offsets = [0, 0], sizes = [16, 128], strides = [1, 1]} : vector<32x128xf32> to vector<16x128xf32>
      %30 = arith.truncf %29 : vector<16x128xf32> to vector<16x128xbf16>
      %c0_20 = arith.constant 0 : index
      %c0_21 = arith.constant 0 : index
      %c0_22 = arith.constant 0 : index
      %31 = vector.load %arg9[%c0_20, %c0_21, %c0_22] : memref<2x16x128xbf16, #tpu.memory_space<vmem>>, vector<1x16x128xbf16>
      %32 = vector.shape_cast %31 : vector<1x16x128xbf16> to vector<16x128xbf16>
      %33 = vector.shape_cast %30 : vector<16x128xbf16> to vector<1x16x128xbf16>
      tpu.vector_store %arg9[%c0_20, %c0_21, %c0_22], %33 {strides = array<i32>} : memref<2x16x128xbf16, #tpu.memory_space<vmem>>, vector<1x16x128xbf16>,
      %34 = vector.extract_strided_slice %28 {offsets = [0, 0], sizes = [8, 128], strides = [1, 1]} : vector<16x128xf32> to vector<8x128xf32>
      %35 = vector.extract_strided_slice %28 {offsets = [8, 0], sizes = [8, 128], strides = [1, 1]} : vector<16x128xf32> to vector<8x128xf32>
      %36 = vector.extract_strided_slice %29 {offsets = [8, 0], sizes = [8, 128], strides = [1, 1]} : vector<16x128xf32> to vector<8x128xf32>
      %c0_23 = arith.constant 0 : index
      %c0_24 = arith.constant 0 : index
      %c0_25 = arith.constant 0 : index
      %37 = vector.load %arg3[%c0_23, %c0_24, %c0_25] : memref<2x8x1xi32, #tpu.memory_space<vmem>>, vector<1x8x1xi32>
      %38 = vector.shape_cast %37 : vector<1x8x1xi32> to vector<8x1xi32>
      %39 = vector.broadcast %38 : vector<8x1xi32> to vector<8x128xi32>
      %40 = arith.cmpi eq, %24, %39 : vector<8x128xi32>
      %41 = arith.extui %40 : vector<8x128xi1> to vector<8x128xi32>
      %42 = arith.sitofp %41 : vector<8x128xi32> to vector<8x128xf32>
      %43 = tpu.transpose %34, [1, 0] : vector<8x128xf32> -> vector<128x8xf32>
      %cst_26 = arith.constant dense<0.000000e+00> : vector<128x128xf32>
      %44 = tpu.matmul %43, %42, %cst_26 {dimension_numbers = #tpu.dot_dimension_numbers<[1], [0], [0], [1], [0, 0, 1, 1], [], []>} : vector<128x8xf32>, vector<8x128xf32>, vector<128x128xf32> -> vector<128x128xf32>
      %cst_27 = arith.constant 1.250000e-01 : f32
      %45 = vector.broadcast %cst_27 : f32 to vector<128x128xf32>
      %46 = arith.mulf %44, %45 : vector<128x128xf32>
      %47 = arith.mulf %46, %46 : vector<128x128xf32>
      %cst_28 = arith.constant dense<0.000000e+00> : vector<128xf32>
      %48 = vector.multi_reduction <add>, %47, %cst_28 [0] : vector<128x128xf32> to vector<128xf32>
      %49 = vector.shape_cast %48 : vector<128xf32> to vector<1x128xf32>
      %cst_29 = arith.constant 1.000000e-16 : f32
      %50 = vector.broadcast %cst_29 : f32 to vector<1x128xf32>
      %51 = arith.maximumf %49, %50 : vector<1x128xf32>
      %52 = math.rsqrt %51 : vector<1x128xf32>
      %53 = arith.mulf %35, %35 : vector<8x128xf32>
      %cst_30 = arith.constant dense<0.000000e+00> : vector<8xf32>
      %54 = vector.multi_reduction <add>, %53, %cst_30 [1] : vector<8x128xf32> to vector<8xf32>
      %55 = vector.shape_cast %54 : vector<8xf32> to vector<8x1xf32>
      %cst_31 = arith.constant 1.000000e-16 : f32
      %56 = vector.broadcast %cst_31 : f32 to vector<8x1xf32>
      %57 = arith.maximumf %55, %56 : vector<8x1xf32>
      %58 = math.rsqrt %57 : vector<8x1xf32>
      %59 = vector.broadcast %52 : vector<1x128xf32> to vector<128x128xf32>
      %60 = arith.mulf %46, %59 : vector<128x128xf32>
      %cst_32 = arith.constant dense<0.000000e+00> : vector<8x128xf32>
      %61 = tpu.matmul %35, %60, %cst_32 {dimension_numbers = #tpu.dot_dimension_numbers<[1], [0], [0], [1], [0, 0, 1, 1], [], []>} : vector<8x128xf32>, vector<128x128xf32>, vector<8x128xf32> -> vector<8x128xf32>
      %62 = vector.broadcast %58 : vector<8x1xf32> to vector<8x128xf32>
      %63 = arith.mulf %61, %62 : vector<8x128xf32>
      %64 = arith.truncf %63 : vector<8x128xf32> to vector<8x128xbf16>
      %c0_33 = arith.constant 0 : index
      %c0_34 = arith.constant 0 : index
      %c0_35 = arith.constant 0 : index
      %65 = vector.load %arg10[%c0_33, %c0_34, %c0_35] : memref<2x8x128xbf16, #tpu.memory_space<vmem>>, vector<1x8x128xbf16>
      %66 = vector.shape_cast %65 : vector<1x8x128xbf16> to vector<8x128xbf16>
      %67 = vector.shape_cast %64 : vector<8x128xbf16> to vector<1x8x128xbf16>
      tpu.vector_store %arg10[%c0_33, %c0_34, %c0_35], %67 {strides = array<i32>} : memref<2x8x128xbf16, #tpu.memory_space<vmem>>, vector<1x8x128xbf16>,
      %cst_36 = arith.constant -1.000000e+30 : f32
      %68 = vector.broadcast %cst_36 : f32 to vector<8x128xf32>
      %69 = arith.select %27, %36, %68 : vector<8x128xi1>, vector<8x128xf32>
      %cst_37 = arith.constant dense<0xFF800000> : vector<8xf32>
      %70 = vector.multi_reduction <maximumf>, %69, %cst_37 [1] : vector<8x128xf32> to vector<8xf32>
      %71 = vector.shape_cast %70 : vector<8xf32> to vector<8x1xf32>
      %72 = vector.broadcast %71 : vector<8x1xf32> to vector<8x128xf32>
      %73 = arith.subf %69, %72 : vector<8x128xf32>
      %74 = math.exp %73 : vector<8x128xf32>
      %cst_38 = arith.constant 0.000000e+00 : f32
      %75 = vector.broadcast %cst_38 : f32 to vector<8x128xf32>
      %76 = arith.select %27, %74, %75 : vector<8x128xi1>, vector<8x128xf32>
      %cst_39 = arith.constant dense<0.000000e+00> : vector<8xf32>
      %77 = vector.multi_reduction <add>, %76, %cst_39 [1] : vector<8x128xf32> to vector<8xf32>
      %78 = vector.shape_cast %77 : vector<8xf32> to vector<8x1xf32>
      %79 = math.log %78 : vector<8x1xf32>
      %80 = arith.addf %79, %71 : vector<8x1xf32>
      %c0_40 = arith.constant 0 : index
      %c0_41 = arith.constant 0 : index
      %c0_42 = arith.constant 0 : index
      %81 = vector.load %arg4[%c0_40, %c0_41, %c0_42] : memref<2x8x1xi32, #tpu.memory_space<vmem>>, vector<1x8x1xi32>
      %82 = vector.shape_cast %81 : vector<1x8x1xi32> to vector<8x1xi32>
      %83 = vector.broadcast %82 : vector<8x1xi32> to vector<8x128xi32>
      %84 = arith.cmpi eq, %25, %83 : vector<8x128xi32>
      %85 = arith.extui %84 : vector<8x128xi1> to vector<8x128xi32>
      %86 = arith.sitofp %85 : vector<8x128xi32> to vector<8x128xf32>
      %87 = vector.broadcast %80 : vector<8x1xf32> to vector<8x128xf32>
      %88 = arith.subf %87, %69 : vector<8x128xf32>
      %89 = arith.mulf %86, %88 : vector<8x128xf32>
      %cst_43 = arith.constant dense<0.000000e+00> : vector<128xf32>
      %90 = vector.multi_reduction <add>, %89, %cst_43 [0] : vector<8x128xf32> to vector<128xf32>
      %91 = vector.shape_cast %90 : vector<128xf32> to vector<1x128xf32>
      %cst_44 = arith.constant dense<0.000000e+00> : vector<1xf32>
      %92 = vector.multi_reduction <add>, %91, %cst_44 [1] : vector<1x128xf32> to vector<1xf32>
      %93 = vector.shape_cast %92 : vector<1xf32> to vector<1x1xf32>
      %cst_45 = arith.constant 1.250000e-01 : f32
      %94 = vector.broadcast %cst_45 : f32 to vector<1x1xf32>
      %95 = arith.mulf %93, %94 : vector<1x1xf32>
      %96 = vector.shape_cast %95 : vector<1x1xf32> to vector<1x1xf32>
      %97 = vector.broadcast %96 : vector<1x1xf32> to vector<1x128xf32>
      %c0_46 = arith.constant 0 : index
      %c0_47 = arith.constant 0 : index
      %c0_48 = arith.constant 0 : index
      %98 = vector.load %arg11[%c0_46, %c0_47, %c0_48] : memref<2x1x128xf32, #tpu.memory_space<vmem>>, vector<1x1x128xf32>
      %99 = vector.shape_cast %98 : vector<1x1x128xf32> to vector<1x128xf32>
      %100 = vector.shape_cast %97 : vector<1x128xf32> to vector<1x1x128xf32>
      tpu.vector_store %arg11[%c0_46, %c0_47, %c0_48], %100 {strides = array<i32>} : memref<2x1x128xf32, #tpu.memory_space<vmem>>, vector<1x1x128xf32>,
      %101 = vector.extract_strided_slice %17 {offsets = [16, 0], sizes = [16, 128], strides = [1, 1]} : vector<32x128xf32> to vector<16x128xf32>
      %102 = vector.extract_strided_slice %23 {offsets = [16, 0], sizes = [16, 128], strides = [1, 1]} : vector<32x128xf32> to vector<16x128xf32>
      %103 = arith.truncf %102 : vector<16x128xf32> to vector<16x128xbf16>
      %c1 = arith.constant 1 : index
      %c0_49 = arith.constant 0 : index
      %c0_50 = arith.constant 0 : index
      %104 = vector.load %arg9[%c1, %c0_49, %c0_50] : memref<2x16x128xbf16, #tpu.memory_space<vmem>>, vector<1x16x128xbf16>
      %105 = vector.shape_cast %104 : vector<1x16x128xbf16> to vector<16x128xbf16>
      %106 = vector.shape_cast %103 : vector<16x128xbf16> to vector<1x16x128xbf16>
      tpu.vector_store %arg9[%c1, %c0_49, %c0_50], %106 {strides = array<i32>} : memref<2x16x128xbf16, #tpu.memory_space<vmem>>, vector<1x16x128xbf16>,
      %107 = vector.extract_strided_slice %101 {offsets = [0, 0], sizes = [8, 128], strides = [1, 1]} : vector<16x128xf32> to vector<8x128xf32>
      %108 = vector.extract_strided_slice %101 {offsets = [8, 0], sizes = [8, 128], strides = [1, 1]} : vector<16x128xf32> to vector<8x128xf32>
      %109 = vector.extract_strided_slice %102 {offsets = [8, 0], sizes = [8, 128], strides = [1, 1]} : vector<16x128xf32> to vector<8x128xf32>
      %c1_51 = arith.constant 1 : index
      %c0_52 = arith.constant 0 : index
      %c0_53 = arith.constant 0 : index
      %110 = vector.load %arg3[%c1_51, %c0_52, %c0_53] : memref<2x8x1xi32, #tpu.memory_space<vmem>>, vector<1x8x1xi32>
      %111 = vector.shape_cast %110 : vector<1x8x1xi32> to vector<8x1xi32>
      %112 = vector.broadcast %111 : vector<8x1xi32> to vector<8x128xi32>
      %113 = arith.cmpi eq, %24, %112 : vector<8x128xi32>
      %114 = arith.extui %113 : vector<8x128xi1> to vector<8x128xi32>
      %115 = arith.sitofp %114 : vector<8x128xi32> to vector<8x128xf32>
      %116 = tpu.transpose %107, [1, 0] : vector<8x128xf32> -> vector<128x8xf32>
      %cst_54 = arith.constant dense<0.000000e+00> : vector<128x128xf32>
      %117 = tpu.matmul %116, %115, %cst_54 {dimension_numbers = #tpu.dot_dimension_numbers<[1], [0], [0], [1], [0, 0, 1, 1], [], []>} : vector<128x8xf32>, vector<8x128xf32>, vector<128x128xf32> -> vector<128x128xf32>
      %cst_55 = arith.constant 1.250000e-01 : f32
      %118 = vector.broadcast %cst_55 : f32 to vector<128x128xf32>
      %119 = arith.mulf %117, %118 : vector<128x128xf32>
      %120 = arith.mulf %119, %119 : vector<128x128xf32>
      %cst_56 = arith.constant dense<0.000000e+00> : vector<128xf32>
      %121 = vector.multi_reduction <add>, %120, %cst_56 [0] : vector<128x128xf32> to vector<128xf32>
      %122 = vector.shape_cast %121 : vector<128xf32> to vector<1x128xf32>
      %cst_57 = arith.constant 1.000000e-16 : f32
      %123 = vector.broadcast %cst_57 : f32 to vector<1x128xf32>
      %124 = arith.maximumf %122, %123 : vector<1x128xf32>
      %125 = math.rsqrt %124 : vector<1x128xf32>
      %126 = arith.mulf %108, %108 : vector<8x128xf32>
      %cst_58 = arith.constant dense<0.000000e+00> : vector<8xf32>
      %127 = vector.multi_reduction <add>, %126, %cst_58 [1] : vector<8x128xf32> to vector<8xf32>
      %128 = vector.shape_cast %127 : vector<8xf32> to vector<8x1xf32>
      %cst_59 = arith.constant 1.000000e-16 : f32
      %129 = vector.broadcast %cst_59 : f32 to vector<8x1xf32>
      %130 = arith.maximumf %128, %129 : vector<8x1xf32>
      %131 = math.rsqrt %130 : vector<8x1xf32>
      %132 = vector.broadcast %125 : vector<1x128xf32> to vector<128x128xf32>
      %133 = arith.mulf %119, %132 : vector<128x128xf32>
      %cst_60 = arith.constant dense<0.000000e+00> : vector<8x128xf32>
      %134 = tpu.matmul %108, %133, %cst_60 {dimension_numbers = #tpu.dot_dimension_numbers<[1], [0], [0], [1], [0, 0, 1, 1], [], []>} : vector<8x128xf32>, vector<128x128xf32>, vector<8x128xf32> -> vector<8x128xf32>
      %135 = vector.broadcast %131 : vector<8x1xf32> to vector<8x128xf32>
      %136 = arith.mulf %134, %135 : vector<8x128xf32>
      %137 = arith.truncf %136 : vector<8x128xf32> to vector<8x128xbf16>
      %c1_61 = arith.constant 1 : index
      %c0_62 = arith.constant 0 : index
      %c0_63 = arith.constant 0 : index
      %138 = vector.load %arg10[%c1_61, %c0_62, %c0_63] : memref<2x8x128xbf16, #tpu.memory_space<vmem>>, vector<1x8x128xbf16>
      %139 = vector.shape_cast %138 : vector<1x8x128xbf16> to vector<8x128xbf16>
      %140 = vector.shape_cast %137 : vector<8x128xbf16> to vector<1x8x128xbf16>
      tpu.vector_store %arg10[%c1_61, %c0_62, %c0_63], %140 {strides = array<i32>} : memref<2x8x128xbf16, #tpu.memory_space<vmem>>, vector<1x8x128xbf16>,
      %cst_64 = arith.constant -1.000000e+30 : f32
      %141 = vector.broadcast %cst_64 : f32 to vector<8x128xf32>
      %142 = arith.select %27, %109, %141 : vector<8x128xi1>, vector<8x128xf32>
      %cst_65 = arith.constant dense<0xFF800000> : vector<8xf32>
      %143 = vector.multi_reduction <maximumf>, %142, %cst_65 [1] : vector<8x128xf32> to vector<8xf32>
      %144 = vector.shape_cast %143 : vector<8xf32> to vector<8x1xf32>
      %145 = vector.broadcast %144 : vector<8x1xf32> to vector<8x128xf32>
      %146 = arith.subf %142, %145 : vector<8x128xf32>
      %147 = math.exp %146 : vector<8x128xf32>
      %cst_66 = arith.constant 0.000000e+00 : f32
      %148 = vector.broadcast %cst_66 : f32 to vector<8x128xf32>
      %149 = arith.select %27, %147, %148 : vector<8x128xi1>, vector<8x128xf32>
      %cst_67 = arith.constant dense<0.000000e+00> : vector<8xf32>
      %150 = vector.multi_reduction <add>, %149, %cst_67 [1] : vector<8x128xf32> to vector<8xf32>
      %151 = vector.shape_cast %150 : vector<8xf32> to vector<8x1xf32>
      %152 = math.log %151 : vector<8x1xf32>
      %153 = arith.addf %152, %144 : vector<8x1xf32>
      %c1_68 = arith.constant 1 : index
      %c0_69 = arith.constant 0 : index
      %c0_70 = arith.constant 0 : index
      %154 = vector.load %arg4[%c1_68, %c0_69, %c0_70] : memref<2x8x1xi32, #tpu.memory_space<vmem>>, vector<1x8x1xi32>
      %155 = vector.shape_cast %154 : vector<1x8x1xi32> to vector<8x1xi32>
      %156 = vector.broadcast %155 : vector<8x1xi32> to vector<8x128xi32>
      %157 = arith.cmpi eq, %25, %156 : vector<8x128xi32>
      %158 = arith.extui %157 : vector<8x128xi1> to vector<8x128xi32>
      %159 = arith.sitofp %158 : vector<8x128xi32> to vector<8x128xf32>
      %160 = vector.broadcast %153 : vector<8x1xf32> to vector<8x128xf32>
      %161 = arith.subf %160, %142 : vector<8x128xf32>
      %162 = arith.mulf %159, %161 : vector<8x128xf32>
      %cst_71 = arith.constant dense<0.000000e+00> : vector<128xf32>
      %163 = vector.multi_reduction <add>, %162, %cst_71 [0] : vector<8x128xf32> to vector<128xf32>
      %164 = vector.shape_cast %163 : vector<128xf32> to vector<1x128xf32>
      %cst_72 = arith.constant dense<0.000000e+00> : vector<1xf32>
      %165 = vector.multi_reduction <add>, %164, %cst_72 [1] : vector<1x128xf32> to vector<1xf32>
      %166 = vector.shape_cast %165 : vector<1xf32> to vector<1x1xf32>
      %cst_73 = arith.constant 1.250000e-01 : f32
      %167 = vector.broadcast %cst_73 : f32 to vector<1x1xf32>
      %168 = arith.mulf %166, %167 : vector<1x1xf32>
      %169 = vector.shape_cast %168 : vector<1x1xf32> to vector<1x1xf32>
      %170 = vector.broadcast %169 : vector<1x1xf32> to vector<1x128xf32>
      %c1_74 = arith.constant 1 : index
      %c0_75 = arith.constant 0 : index
      %c0_76 = arith.constant 0 : index
      %171 = vector.load %arg11[%c1_74, %c0_75, %c0_76] : memref<2x1x128xf32, #tpu.memory_space<vmem>>, vector<1x1x128xf32>
      %172 = vector.shape_cast %171 : vector<1x1x128xf32> to vector<1x128xf32>
      %173 = vector.shape_cast %170 : vector<1x128xf32> to vector<1x1x128xf32>
      tpu.vector_store %arg11[%c1_74, %c0_75, %c0_76], %173 {strides = array<i32>} : memref<2x1x128xf32, #tpu.memory_space<vmem>>, vector<1x1x128xf32>,
    } else {
    }
    return
  }
  func.func @transform_0(%arg0: i32, %arg1: i32) -> (i32, i32) {
    %c0_i32 = arith.constant 0 : i32
    return %arg0, %arg1 : i32, i32
  }
  func.func @transform_1(%arg0: i32, %arg1: i32) -> (i32, i32, i32) {
    %c0_i32 = arith.constant 0 : i32
    %c0_i32_0 = arith.constant 0 : i32
    %c0_i32_1 = arith.constant 0 : i32
    return %arg0, %c0_i32, %c0_i32_0 : i32, i32, i32
  }
  func.func @transform_2(%arg0: i32, %arg1: i32) -> (i32, i32, i32) {
    %c0_i32 = arith.constant 0 : i32
    %c0_i32_0 = arith.constant 0 : i32
    %c0_i32_1 = arith.constant 0 : i32
    return %arg0, %c0_i32, %c0_i32_0 : i32, i32, i32
  }
  func.func @transform_3(%arg0: i32, %arg1: i32) -> (i32, i32) {
    %c0_i32 = arith.constant 0 : i32
    %c0_i32_0 = arith.constant 0 : i32
    %c0_i32_1 = arith.constant 0 : i32
    return %c0_i32, %c0_i32_0 : i32, i32
  }
  func.func @transform_4(%arg0: i32, %arg1: i32) -> (i32, i32) {
    %c0_i32 = arith.constant 0 : i32
    %c0_i32_0 = arith.constant 0 : i32
    %c0_i32_1 = arith.constant 0 : i32
    return %c0_i32, %c0_i32_0 : i32, i32
  }
  func.func @transform_5(%arg0: i32, %arg1: i32) -> (i32, i32) {
    %c0_i32 = arith.constant 0 : i32
    %c0_i32_0 = arith.constant 0 : i32
    %c0_i32_1 = arith.constant 0 : i32
    return %c0_i32, %c0_i32_0 : i32, i32
  }
  func.func @transform_6(%arg0: i32, %arg1: i32) -> (i32, i32) {
    %c0_i32 = arith.constant 0 : i32
    %c0_i32_0 = arith.constant 0 : i32
    %c0_i32_1 = arith.constant 0 : i32
    return %c0_i32, %c0_i32_0 : i32, i32
  }
  func.func @transform_7(%arg0: i32, %arg1: i32) -> (i32, i32, i32) {
    %c0_i32 = arith.constant 0 : i32
    %c0_i32_0 = arith.constant 0 : i32
    %c0_i32_1 = arith.constant 0 : i32
    return %arg0, %c0_i32, %c0_i32_0 : i32, i32, i32
  }
  func.func @transform_8(%arg0: i32, %arg1: i32) -> (i32, i32, i32) {
    %c0_i32 = arith.constant 0 : i32
    %c0_i32_0 = arith.constant 0 : i32
    %c0_i32_1 = arith.constant 0 : i32
    return %arg0, %c0_i32, %c0_i32_0 : i32, i32, i32
  }
  func.func @transform_9(%arg0: i32, %arg1: i32) -> (i32, i32, i32) {
    %c0_i32 = arith.constant 0 : i32
    %c0_i32_0 = arith.constant 0 : i32
    %c0_i32_1 = arith.constant 0 : i32
    return %arg0, %c0_i32, %c0_i32_0 : i32, i32, i32
  }
}

</mosaic_0001>

<llo_original>
// kernel: _cls_forward.1
$region0: #{_cls_forward.1}
  #allocation0 [shape = 'u32[]', space=smem, size = 0x4, offset = 0x4, fixed_abs, tag = 'smem constant byte address 0x4 - core index']
  #allocation1 [shape = 'u32[144,128]{1,0:T(1,128)}', space=vmem, size = 0x12000, scoped, tag = 'internal scratch']
  #allocation2 [shape = 'f32[32,128]{1,0:T(8,128)}', space=vmem, size = 0x4000, scoped, tag = 'scratch operand']
  %s0 = inlined_call_operand.vmem [shape: bf16[32,256], index: 0, kind: input, shape index: {}]
  %s1 = inlined_call_operand.vmem [shape: s32[2,8,1], index: 1, kind: input, shape index: {}]
  %s2 = inlined_call_operand.vmem [shape: s32[2,8,1], index: 2, kind: input, shape index: {}]
  %s3 = inlined_call_operand.vmem [shape: bf16[256,128], index: 3, kind: input, shape index: {}]
  %s4 = inlined_call_operand.vmem [shape: f32[1,128], index: 4, kind: input, shape index: {}]
  %s5 = inlined_call_operand.vmem [shape: bf16[128,128], index: 5, kind: input, shape index: {}]
  %s6 = inlined_call_operand.vmem [shape: f32[1,128], index: 6, kind: input, shape index: {}]
  %s7 = inlined_call_operand.vmem [shape: bf16[2,16,128], index: 7, kind: output, shape index: {0}]
  %s8 = inlined_call_operand.vmem [shape: bf16[2,8,128], index: 8, kind: output, shape index: {1}]
  %s9 = inlined_call_operand.vmem [shape: f32[2,1,128], index: 9, kind: output, shape index: {2}]
  %10 = xla_tuple %s7, %s8, %s9
  %s11 = sld [smem:[#allocation0]]
  $region62: #{_cls_forward.1} parent=0
    _
  %s13 = ssub.s32 1, %s11
  %s14 = scalar_select 0, %s13, %s11
  // Predicated region
  $region2: #{_cls_forward.1} parent=0 // pred_check
    _
  $region3: #{_cls_forward.1} parent=0 // pred_check_branch
    %16 = sbr.rel (0) target = $region5
  $region4: #{_cls_forward.1} parent=0 // pred_region
    _
  $region5: #{_cls_forward.1} parent=0 // pred_fallthru
    _
  // Predicated region
  $region6: #{_cls_forward.1} parent=0 // pred_check
    _
  $region7: #{_cls_forward.1} parent=0 // pred_check_branch
    %18 = sbr.rel (0) target = $region9
  $region8: #{_cls_forward.1} parent=0 // pred_region
    _
  $region9: #{_cls_forward.1} parent=0 // pred_fallthru
    _
  // Predicated region
  $region10: #{_cls_forward.1} parent=0 // pred_check
    _
  $region11: #{_cls_forward.1} parent=0 // pred_check_branch
    %20 = sbr.rel (0) target = $region13
  $region12: #{_cls_forward.1} parent=0 // pred_region
    _
  $region13: #{_cls_forward.1} parent=0 // pred_fallthru
    _
  // Predicated region
  $region14: #{_cls_forward.1} parent=0 // pred_check
    _
  $region15: #{_cls_forward.1} parent=0 // pred_check_branch
    %22 = sbr.rel (0) target = $region17
  $region16: #{_cls_forward.1} parent=0 // pred_region
    _
  $region17: #{_cls_forward.1} parent=0 // pred_fallthru
    _
  // Predicated region
  $region18: #{_cls_forward.1} parent=0 // pred_check
    _
  $region19: #{_cls_forward.1} parent=0 // pred_check_branch
    %24 = sbr.rel (0) target = $region21
  $region20: #{_cls_forward.1} parent=0 // pred_region
    _
  $region21: #{_cls_forward.1} parent=0 // pred_fallthru
    _
  // Predicated region
  $region22: #{_cls_forward.1} parent=0 // pred_check
    _
  $region23: #{_cls_forward.1} parent=0 // pred_check_branch
    %26 = sbr.rel (0) target = $region25
  $region24: #{_cls_forward.1} parent=0 // pred_region
    _
  $region25: #{_cls_forward.1} parent=0 // pred_fallthru
    _
  // Predicated region
  $region26: #{_cls_forward.1} parent=0 // pred_check
    _
  $region27: #{_cls_forward.1} parent=0 // pred_check_branch
    %28 = sbr.rel (0) target = $region29
  $region28: #{_cls_forward.1} parent=0 // pred_region
    _
  $region29: #{_cls_forward.1} parent=0 // pred_fallthru
    _
  %p30 = scmp.eq.s32.totalorder 0, 0
  // Predicated region
  $region30: #{_cls_forward.1} parent=0 // pred_check
    %p31 = pneg %p30
  $region31: #{_cls_forward.1} parent=0 // pred_check_branch
    %33 = sbr.rel (%p31) target = $region33
  $region32: #{_cls_forward.1} parent=0 // pred_region
    %34 = vst [vmem:[#allocation2] sm:$0xff] 0.0
    %35 = vst [vmem:[#allocation2 + $0x8] sm:$0xff] 0.0
    %36 = vst [vmem:[#allocation2 + $0x10] sm:$0xff] 0.0
    %37 = vst [vmem:[#allocation2 + $0x18] sm:$0xff] 0.0
  $region33: #{_cls_forward.1} parent=0 // pred_fallthru
    _
  %v38 = vld [vmem:[#allocation2] sm:$0xff]
  %v39 = vld [vmem:[#allocation2 + $0x8] sm:$0xff]
  %v40 = vld [vmem:[#allocation2 + $0x10] sm:$0xff]
  %v41 = vld [vmem:[#allocation2 + $0x18] sm:$0xff]
  %v42 = vld [vmem:[%s0] sm:$0xff]
  %v43 = vld [vmem:[%s0 + $0x8] sm:$0xff]
  %v44 = vld [vmem:[%s0 + $0x10] sm:$0xff]
  %v45 = vld [vmem:[%s0 + $0x18] sm:$0xff]
  %v46 = vld [vmem:[%s3] sm:$0xf]
  %v47 = vld [vmem:[%s3 + $0x4] sm:$0xf]
  %v48 = vld [vmem:[%s3 + $0x8] sm:$0xf]
  %v49 = vld [vmem:[%s3 + $0xc] sm:$0xf]
  %v50 = vld [vmem:[%s3 + $0x10] sm:$0xf]
  %v51 = vld [vmem:[%s3 + $0x14] sm:$0xf]
  %v52 = vld [vmem:[%s3 + $0x18] sm:$0xf]
  %v53 = vld [vmem:[%s3 + $0x1c] sm:$0xf]
  %v54 = vld [vmem:[%s3 + $0x20] sm:$0xf]
  %v55 = vld [vmem:[%s3 + $0x24] sm:$0xf]
  %v56 = vld [vmem:[%s3 + $0x28] sm:$0xf]
  %v57 = vld [vmem:[%s3 + $0x2c] sm:$0xf]
  %v58 = vld [vmem:[%s3 + $0x30] sm:$0xf]
  %v59 = vld [vmem:[%s3 + $0x34] sm:$0xf]
  %v60 = vld [vmem:[%s3 + $0x38] sm:$0xf]
  %v61 = vld [vmem:[%s3 + $0x3c] sm:$0xf]
  %v62 = vld [vmem:[%s3 + $0x40] sm:$0xf]
  %v63 = vld [vmem:[%s3 + $0x44] sm:$0xf]
  %v64 = vld [vmem:[%s3 + $0x48] sm:$0xf]
  %v65 = vld [vmem:[%s3 + $0x4c] sm:$0xf]
  %v66 = vld [vmem:[%s3 + $0x50] sm:$0xf]
  %v67 = vld [vmem:[%s3 + $0x54] sm:$0xf]
  %v68 = vld [vmem:[%s3 + $0x58] sm:$0xf]
  %v69 = vld [vmem:[%s3 + $0x5c] sm:$0xf]
  %v70 = vld [vmem:[%s3 + $0x60] sm:$0xf]
  %v71 = vld [vmem:[%s3 + $0x64] sm:$0xf]
  %v72 = vld [vmem:[%s3 + $0x68] sm:$0xf]
  %v73 = vld [vmem:[%s3 + $0x6c] sm:$0xf]
  %v74 = vld [vmem:[%s3 + $0x70] sm:$0xf]
  %v75 = vld [vmem:[%s3 + $0x74] sm:$0xf]
  %v76 = vld [vmem:[%s3 + $0x78] sm:$0xf]
  %v77 = vld [vmem:[%s3 + $0x7c] sm:$0xf]
  %v82 = vunpack.c.l.b16 %v42
  %v83 = vunpack.c.h.b16 %v42
  %v84 = vunpack.c.l.b16 %v43
  %v85 = vunpack.c.h.b16 %v43
  %v86 = vunpack.c.l.b16 %v44
  %v87 = vunpack.c.h.b16 %v44
  %v88 = vunpack.c.l.b16 %v45
  %v89 = vunpack.c.h.b16 %v45
  %v90 = vpack.c.b16 %v84, %v82
  %v91 = vpack.c.b16 %v85, %v83
  %v92 = vpack.c.b16 %v88, %v86
  %v93 = vpack.c.b16 %v89, %v87
  %v130 = vunpack.c.l.b16 %v46
  %v131 = vunpack.c.l.b16 %v47
  %v132 = vunpack.c.l.b16 %v48
  %v133 = vunpack.c.l.b16 %v49
  %v134 = vunpack.c.l.b16 %v50
  %v135 = vunpack.c.l.b16 %v51
  %v136 = vunpack.c.l.b16 %v52
  %v137 = vunpack.c.l.b16 %v53
  %v138 = vunpack.c.l.b16 %v54
  %v139 = vunpack.c.l.b16 %v55
  %v140 = vunpack.c.l.b16 %v56
  %v141 = vunpack.c.l.b16 %v57
  %v142 = vunpack.c.l.b16 %v58
  %v143 = vunpack.c.l.b16 %v59
  %v144 = vunpack.c.l.b16 %v60
  %v145 = vunpack.c.l.b16 %v61
  %v146 = vunpack.c.l.b16 %v62
  %v147 = vunpack.c.l.b16 %v63
  %v148 = vunpack.c.l.b16 %v64
  %v149 = vunpack.c.l.b16 %v65
  %v150 = vunpack.c.l.b16 %v66
  %v151 = vunpack.c.l.b16 %v67
  %v152 = vunpack.c.l.b16 %v68
  %v153 = vunpack.c.l.b16 %v69
  %v154 = vunpack.c.l.b16 %v70
  %v155 = vunpack.c.l.b16 %v71
  %v156 = vunpack.c.l.b16 %v72
  %v157 = vunpack.c.l.b16 %v73
  %v158 = vunpack.c.l.b16 %v74
  %v159 = vunpack.c.l.b16 %v75
  %v160 = vunpack.c.l.b16 %v76
  %v161 = vunpack.c.l.b16 %v77
  %v162 = vpack.c.b16 %v131, %v130
  %v163 = vpack.c.b16 %v133, %v132
  %v164 = vpack.c.b16 %v135, %v134
  %v165 = vpack.c.b16 %v137, %v136
  %v166 = vpack.c.b16 %v139, %v138
  %v167 = vpack.c.b16 %v141, %v140
  %v168 = vpack.c.b16 %v143, %v142
  %v169 = vpack.c.b16 %v145, %v144
  %v170 = vpack.c.b16 %v147, %v146
  %v171 = vpack.c.b16 %v149, %v148
  %v172 = vpack.c.b16 %v151, %v150
  %v173 = vpack.c.b16 %v153, %v152
  %v174 = vpack.c.b16 %v155, %v154
  %v175 = vpack.c.b16 %v157, %v156
  %v176 = vpack.c.b16 %v159, %v158
  %v177 = vpack.c.b16 %v161, %v160
  %194 = vmatprep.subr.bf16.mxu0 0
  %195 = vmatpush1.bf16.msra.mxu0 %v169
  %196 = vmatprep.subr.bf16.mxu0 0
  %197 = vmatpush1.bf16.msra.mxu0 %v168
  %198 = vmatprep.subr.bf16.mxu0 0
  %199 = vmatpush1.bf16.msra.mxu0 %v167
  %200 = vmatprep.subr.bf16.mxu0 0
  %201 = vmatpush1.bf16.msra.mxu0 %v166
  %202 = vmatprep.subr.bf16.mxu0 0
  %203 = vmatpush1.bf16.msra.mxu0 %v165
  %204 = vmatprep.subr.bf16.mxu0 0
  %205 = vmatpush1.bf16.msra.mxu0 %v164
  %206 = vmatprep.subr.bf16.mxu0 0
  %207 = vmatpush1.bf16.msra.mxu0 %v163
  %208 = vmatprep.subr.bf16.mxu0 0
  %209 = vmatpush1.bf16.msra.mxu0 %v162
  %210 = vmatprep.subr.bf16.mxu0 0
  %211 = vmatpush2.bf16.msra.mxu0 %v177
  %212 = vmatprep.subr.bf16.mxu0 0
  %213 = vmatpush2.bf16.msra.mxu0 %v176
  %214 = vmatprep.subr.bf16.mxu0 0
  %215 = vmatpush2.bf16.msra.mxu0 %v175
  %216 = vmatprep.subr.bf16.mxu0 0
  %217 = vmatpush2.bf16.msra.mxu0 %v174
  %218 = vmatprep.subr.bf16.mxu0 0
  %219 = vmatpush2.bf16.msra.mxu0 %v173
  %220 = vmatprep.subr.bf16.mxu0 0
  %221 = vmatpush2.bf16.msra.mxu0 %v172
  %222 = vmatprep.subr.bf16.mxu0 0
  %223 = vmatpush2.bf16.msra.mxu0 %v171
  %224 = vmatprep.subr.bf16.mxu0 0
  %225 = vmatpush2.bf16.msra.mxu0 %v170
  %226 = vmatprep.mubr.bf16.mxu0 %v91
  %227 = vmatmul.mubr.bf16.gmra.mxu0 %v90
  %v228 = vpop.f32.mrf.mxu0
  %v229 = vadd.f32 0.0, %v228
  %v230 = vpop.f32.mrf.mxu0
  %v231 = vpop.f32.mrf.mxu0
  %v232 = vadd.f32 0.0, %v231
  %v233 = vpop.f32.mrf.mxu0
  %234 = vmatprep.mubr.bf16.mxu0 %v93
  %235 = vmatmul.mubr.bf16.gmra.mxu0 %v92
  %v236 = vpop.f32.mrf.mxu0
  %v237 = vadd.f32 0.0, %v236
  %v238 = vpop.f32.mrf.mxu0
  %v239 = vpop.f32.mrf.mxu0
  %v240 = vadd.f32 0.0, %v239
  %v241 = vpop.f32.mrf.mxu0
  %242 = vdwg.mxu0
  %v243 = vadd.f32 %v38, %v229
  %v244 = vadd.f32 %v39, %v232
  %v245 = vadd.f32 %v40, %v237
  %v246 = vadd.f32 %v41, %v240
  %247 = vst [vmem:[#allocation2] sm:$0xff] %v243
  %248 = vst [vmem:[#allocation2 + $0x8] sm:$0xff] %v244
  %249 = vst [vmem:[#allocation2 + $0x10] sm:$0xff] %v245
  %250 = vst [vmem:[#allocation2 + $0x18] sm:$0xff] %v246
  // Predicated region
  $region34: #{_cls_forward.1} parent=0 // pred_check
    %p251 = pneg %p30
  $region35: #{_cls_forward.1} parent=0 // pred_check_branch
    %253 = sbr.rel (%p251) target = $region37
  $region36: #{_cls_forward.1} parent=0 // pred_region
    %v254 = vld [vmem:[#allocation2] sm:$0xff]
    %v255 = vld [vmem:[#allocation2 + $0x8] sm:$0xff]
    %v256 = vld [vmem:[#allocation2 + $0x10] sm:$0xff]
    %v257 = vld [vmem:[#allocation2 + $0x18] sm:$0xff]
    %v258 = vld [vmem:[%s4] sm:$0x1]
    %v260 = vlaneseq
    %v261 = vshrl.u32 %v260, 7
    %v262 = vsub.s32 0, %v261
    %v263 = vrot.slane %v258, %v262
    %v265 = vadd.f32 %v254, %v263
    %v266 = vadd.f32 %v255, %v263
    %v267 = vadd.f32 %v256, %v263
    %v268 = vadd.f32 %v257, %v263
    %v269 = vmax.f32 %v265, 0.0
    %v270 = vmax.f32 %v266, 0.0
    %v271 = vmax.f32 %v267, 0.0
    %v272 = vmax.f32 %v268, 0.0
    %v273 = vpack.c.bf16 %v270, %v269
    %v274 = vpack.c.bf16 %v272, %v271
    %v275 = vld [vmem:[%s5] sm:$0xf]
    %v276 = vld [vmem:[%s5 + $0x4] sm:$0xf]
    %v277 = vld [vmem:[%s5 + $0x8] sm:$0xf]
    %v278 = vld [vmem:[%s5 + $0xc] sm:$0xf]
    %v279 = vld [vmem:[%s5 + $0x10] sm:$0xf]
    %v280 = vld [vmem:[%s5 + $0x14] sm:$0xf]
    %v281 = vld [vmem:[%s5 + $0x18] sm:$0xf]
    %v282 = vld [vmem:[%s5 + $0x1c] sm:$0xf]
    %v283 = vld [vmem:[%s5 + $0x20] sm:$0xf]
    %v284 = vld [vmem:[%s5 + $0x24] sm:$0xf]
    %v285 = vld [vmem:[%s5 + $0x28] sm:$0xf]
    %v286 = vld [vmem:[%s5 + $0x2c] sm:$0xf]
    %v287 = vld [vmem:[%s5 + $0x30] sm:$0xf]
    %v288 = vld [vmem:[%s5 + $0x34] sm:$0xf]
    %v289 = vld [vmem:[%s5 + $0x38] sm:$0xf]
    %v290 = vld [vmem:[%s5 + $0x3c] sm:$0xf]
    %v291 = vld [vmem:[%s6] sm:$0x1]
    %v293 = vlaneseq
    %v294 = vshrl.u32 %v293, 7
    %v295 = vsub.s32 0, %v294
    %v296 = vrot.slane %v291, %v295
    %v314 = vunpack.c.l.b16 %v275
    %v315 = vunpack.c.l.b16 %v276
    %v316 = vunpack.c.l.b16 %v277
    %v317 = vunpack.c.l.b16 %v278
    %v318 = vunpack.c.l.b16 %v279
    %v319 = vunpack.c.l.b16 %v280
    %v320 = vunpack.c.l.b16 %v281
    %v321 = vunpack.c.l.b16 %v282
    %v322 = vunpack.c.l.b16 %v283
    %v323 = vunpack.c.l.b16 %v284
    %v324 = vunpack.c.l.b16 %v285
    %v325 = vunpack.c.l.b16 %v286
    %v326 = vunpack.c.l.b16 %v287
    %v327 = vunpack.c.l.b16 %v288
    %v328 = vunpack.c.l.b16 %v289
    %v329 = vunpack.c.l.b16 %v290
    %v330 = vpack.c.b16 %v315, %v314
    %v331 = vpack.c.b16 %v317, %v316
    %v332 = vpack.c.b16 %v319, %v318
    %v333 = vpack.c.b16 %v321, %v320
    %v334 = vpack.c.b16 %v323, %v322
    %v335 = vpack.c.b16 %v325, %v324
    %v336 = vpack.c.b16 %v327, %v326
    %v337 = vpack.c.b16 %v329, %v328
    %346 = vmatprep.subr.bf16.mxu0 0
    %347 = vmatpush1.bf16.msra.mxu0 %v337
    %348 = vmatprep.subr.bf16.mxu0 0
    %349 = vmatpush1.bf16.msra.mxu0 %v336
    %350 = vmatprep.subr.bf16.mxu0 0
    %351 = vmatpush1.bf16.msra.mxu0 %v335
    %352 = vmatprep.subr.bf16.mxu0 0
    %353 = vmatpush1.bf16.msra.mxu0 %v334
    %354 = vmatprep.subr.bf16.mxu0 0
    %355 = vmatpush1.bf16.msra.mxu0 %v333
    %356 = vmatprep.subr.bf16.mxu0 0
    %357 = vmatpush1.bf16.msra.mxu0 %v332
    %358 = vmatprep.subr.bf16.mxu0 0
    %359 = vmatpush1.bf16.msra.mxu0 %v331
    %360 = vmatprep.subr.bf16.mxu0 0
    %361 = vmatpush1.bf16.msra.mxu0 %v330
    %362 = vmatprep.subr.bf16.mxu0 0
    %363 = vmatpush2.bf16.msra.mxu0 0
    %364 = vmatprep.subr.bf16.mxu0 0
    %365 = vmatpush2.bf16.msra.mxu0 0
    %366 = vmatprep.subr.bf16.mxu0 0
    %367 = vmatpush2.bf16.msra.mxu0 0
    %368 = vmatprep.subr.bf16.mxu0 0
    %369 = vmatpush2.bf16.msra.mxu0 0
    %370 = vmatprep.subr.bf16.mxu0 0
    %371 = vmatpush2.bf16.msra.mxu0 0
    %372 = vmatprep.subr.bf16.mxu0 0
    %373 = vmatpush2.bf16.msra.mxu0 0
    %374 = vmatprep.subr.bf16.mxu0 0
    %375 = vmatpush2.bf16.msra.mxu0 0
    %376 = vmatprep.subr.bf16.mxu0 0
    %377 = vmatpush2.bf16.msra.mxu0 0
    %378 = vmatprep.mubr.bf16.mxu0 0
    %379 = vmatmul.mubr.bf16.gmra.mxu0 %v273
    %v380 = vpop.f32.mrf.mxu0
    %v381 = vadd.f32 %v296, %v380
    %v382 = vpop.f32.mrf.mxu0
    %v383 = vpop.f32.mrf.mxu0
    %v384 = vadd.f32 %v296, %v383
    %v385 = vpop.f32.mrf.mxu0
    %386 = vmatprep.mubr.bf16.mxu0 0
    %387 = vmatmul.mubr.bf16.gmra.mxu0 %v274
    %v388 = vpop.f32.mrf.mxu0
    %v389 = vadd.f32 %v296, %v388
    %v390 = vpop.f32.mrf.mxu0
    %v391 = vpop.f32.mrf.mxu0
    %v392 = vadd.f32 %v296, %v391
    %v393 = vpop.f32.mrf.mxu0
    %394 = vdwg.mxu0
    %v395 = vlaneseq
    %v396 = vand.u32 %v395, 127
    %vm397 = vcmp.lt.s32.totalorder %v396, 4
    %v398 = vpack.c.bf16 %v384, %v381
    %v400 = vunpack.c.l.b16 %v398
    %v401 = vunpack.c.h.b16 %v398
    %v402 = vpack.c.b16 %v400, %v400
    %v403 = vpack.c.b16 %v401, %v401
    %406 = vst [vmem:[%s7] sm:$0xf] %v402
    %407 = vst [vmem:[%s7 + $0x4] sm:$0xf] %v403
    %v408 = vld [vmem:[%s1] sm:$0xff]
    %409 = vset.pattern.permute.xlu0 0
    %410 = vperm.xlu0 %409, %v408
    %v411 = vpop.permute.xlu0 %410
    %vm412 = vcmp.eq.s32.totalorder %v396, %v411
    %v413 = vsel %vm412, 1, 0
    %v414 = vcvt.s32.f32 %v413
    %415 = vxpose.xlu0.b32.start [1/16] %v269, 128
    %416 = vxpose.xlu0.b32.cont [2/16] 0.0, 128
    %417 = vxpose.xlu0.b32.cont [3/16] 0.0, 128
    %418 = vxpose.xlu0.b32.cont [4/16] 0.0, 128
    %419 = vxpose.xlu0.b32.cont [5/16] 0.0, 128
    %420 = vxpose.xlu0.b32.cont [6/16] 0.0, 128
    %421 = vxpose.xlu0.b32.cont [7/16] 0.0, 128
    %422 = vxpose.xlu0.b32.cont [8/16] 0.0, 128
    %423 = vxpose.xlu0.b32.cont [9/16] 0.0, 128
    %424 = vxpose.xlu0.b32.cont [10/16] 0.0, 128
    %425 = vxpose.xlu0.b32.cont [11/16] 0.0, 128
    %426 = vxpose.xlu0.b32.cont [12/16] 0.0, 128
    %427 = vxpose.xlu0.b32.cont [13/16] 0.0, 128
    %428 = vxpose.xlu0.b32.cont [14/16] 0.0, 128
    %429 = vxpose.xlu0.b32.cont [15/16] 0.0, 128
    %430 = vxpose.xlu0.b32.end [16/16] 0.0, 128
    %v431 = vpop.trf.xlu0
    %v432 = vpop.trf.xlu0
    %v433 = vpop.trf.xlu0
    %v434 = vpop.trf.xlu0
    %v435 = vpop.trf.xlu0
    %v436 = vpop.trf.xlu0
    %v437 = vpop.trf.xlu0
    %v438 = vpop.trf.xlu0
    %v439 = vpop.trf.xlu0
    %v440 = vpop.trf.xlu0
    %v441 = vpop.trf.xlu0
    %v442 = vpop.trf.xlu0
    %v443 = vpop.trf.xlu0
    %v444 = vpop.trf.xlu0
    %v445 = vpop.trf.xlu0
    %v446 = vpop.trf.xlu0
    %vm447 = vcmask 64512
    %v449 = vsel %vm447, %v431, 0
    %v452 = vsel %vm447, %v432, 0
    %v455 = vsel %vm447, %v433, 0
    %v458 = vsel %vm447, %v434, 0
    %v461 = vsel %vm447, %v435, 0
    %v464 = vsel %vm447, %v436, 0
    %v467 = vsel %vm447, %v437, 0
    %v470 = vsel %vm447, %v438, 0
    %v473 = vsel %vm447, %v439, 0
    %v476 = vsel %vm447, %v440, 0
    %v479 = vsel %vm447, %v441, 0
    %v482 = vsel %vm447, %v442, 0
    %v485 = vsel %vm447, %v443, 0
    %v488 = vsel %vm447, %v444, 0
    %v491 = vsel %vm447, %v445, 0
    %v494 = vsel %vm447, %v446, 0
    %496 = vmatprep.subr.mxu0 0.0
    %497 = vmatpush1.msra.mxu0 0.0
    %498 = vmatprep.subr.mxu0 0.0
    %499 = vmatpush1.msra.mxu0 0.0
    %500 = vmatprep.subr.mxu0 0.0
    %501 = vmatpush1.msra.mxu0 0.0
    %502 = vmatprep.subr.mxu0 0.0
    %503 = vmatpush1.msra.mxu0 0.0
    %504 = vmatprep.subr.mxu0 0.0
    %505 = vmatpush1.msra.mxu0 0.0
    %506 = vmatprep.subr.mxu0 0.0
    %507 = vmatpush1.msra.mxu0 0.0
    %508 = vmatprep.subr.mxu0 0.0
    %509 = vmatpush1.msra.mxu0 0.0
    %510 = vmatprep.subr.mxu0 0.0
    %511 = vmatpush1.msra.mxu0 0.0
    %512 = vmatprep.subr.mxu0 0.0
    %513 = vmatpush1.msra.mxu0 0.0
    %514 = vmatprep.subr.mxu0 0.0
    %515 = vmatpush1.msra.mxu0 0.0
    %516 = vmatprep.subr.mxu0 0.0
    %517 = vmatpush1.msra.mxu0 0.0
    %518 = vmatprep.subr.mxu0 0.0
    %519 = vmatpush1.msra.mxu0 0.0
    %520 = vmatprep.subr.mxu0 0.0
    %521 = vmatpush1.msra.mxu0 0.0
    %522 = vmatprep.subr.mxu0 0.0
    %523 = vmatpush1.msra.mxu0 0.0
    %524 = vmatprep.subr.mxu0 0.0
    %525 = vmatpush1.msra.mxu0 0.0
    %526 = vmatprep.subr.mxu0 0.0
    %527 = vmatpush1.msra.mxu0 %v414
    %528 = vmatprep.subr.mxu0 0.0
    %529 = vmatpush2.msra.mxu0 0.0
    %530 = vmatprep.subr.mxu0 0.0
    %531 = vmatpush2.msra.mxu0 0.0
    %532 = vmatprep.subr.mxu0 0.0
    %533 = vmatpush2.msra.mxu0 0.0
    %534 = vmatprep.subr.mxu0 0.0
    %535 = vmatpush2.msra.mxu0 0.0
    %536 = vmatprep.subr.mxu0 0.0
    %537 = vmatpush2.msra.mxu0 0.0
    %538 = vmatprep.subr.mxu0 0.0
    %539 = vmatpush2.msra.mxu0 0.0
    %540 = vmatprep.subr.mxu0 0.0
    %541 = vmatpush2.msra.mxu0 0.0
    %542 = vmatprep.subr.mxu0 0.0
    %543 = vmatpush2.msra.mxu0 0.0
    %544 = vmatprep.subr.mxu0 0.0
    %545 = vmatpush2.msra.mxu0 0.0
    %546 = vmatprep.subr.mxu0 0.0
    %547 = vmatpush2.msra.mxu0 0.0
    %548 = vmatprep.subr.mxu0 0.0
    %549 = vmatpush2.msra.mxu0 0.0
    %550 = vmatprep.subr.mxu0 0.0
    %551 = vmatpush2.msra.mxu0 0.0
    %552 = vmatprep.subr.mxu0 0.0
    %553 = vmatpush2.msra.mxu0 0.0
    %554 = vmatprep.subr.mxu0 0.0
    %555 = vmatpush2.msra.mxu0 0.0
    %556 = vmatprep.subr.mxu0 0.0
    %557 = vmatpush2.msra.mxu0 0.0
    %558 = vmatprep.subr.mxu0 0.0
    %559 = vmatpush2.msra.mxu0 0.0
    %560 = vmatprep.mubr.f32.mxu0 0.0
    %561 = vmatmul.mubr.f32.gmra.mxu0 %v449
    %v562 = vpop.f32.mrf.mxu0
    %v563 = vadd.f32 0.0, %v562
    %v564 = vpop.f32.mrf.mxu0
    %565 = vmatprep.mubr.f32.mxu0 0.0
    %566 = vmatmul.mubr.f32.gmra.mxu0 %v452
    %v567 = vpop.f32.mrf.mxu0
    %v568 = vadd.f32 0.0, %v567
    %v569 = vpop.f32.mrf.mxu0
    %570 = vmatprep.mubr.f32.mxu0 0.0
    %571 = vmatmul.mubr.f32.gmra.mxu0 %v455
    %v572 = vpop.f32.mrf.mxu0
    %v573 = vadd.f32 0.0, %v572
    %v574 = vpop.f32.mrf.mxu0
    %575 = vmatprep.mubr.f32.mxu0 0.0
    %576 = vmatmul.mubr.f32.gmra.mxu0 %v458
    %v577 = vpop.f32.mrf.mxu0
    %v578 = vadd.f32 0.0, %v577
    %v579 = vpop.f32.mrf.mxu0
    %580 = vmatprep.mubr.f32.mxu0 0.0
    %581 = vmatmul.mubr.f32.gmra.mxu0 %v461
    %v582 = vpop.f32.mrf.mxu0
    %v583 = vadd.f32 0.0, %v582
    %v584 = vpop.f32.mrf.mxu0
    %585 = vmatprep.mubr.f32.mxu0 0.0
    %586 = vmatmul.mubr.f32.gmra.mxu0 %v464
    %v587 = vpop.f32.mrf.mxu0
    %v588 = vadd.f32 0.0, %v587
    %v589 = vpop.f32.mrf.mxu0
    %590 = vmatprep.mubr.f32.mxu0 0.0
    %591 = vmatmul.mubr.f32.gmra.mxu0 %v467
    %v592 = vpop.f32.mrf.mxu0
    %v593 = vadd.f32 0.0, %v592
    %v594 = vpop.f32.mrf.mxu0
    %595 = vmatprep.mubr.f32.mxu0 0.0
    %596 = vmatmul.mubr.f32.gmra.mxu0 %v470
    %v597 = vpop.f32.mrf.mxu0
    %v598 = vadd.f32 0.0, %v597
    %v599 = vpop.f32.mrf.mxu0
    %600 = vmatprep.mubr.f32.mxu0 0.0
    %601 = vmatmul.mubr.f32.gmra.mxu0 %v473
    %v602 = vpop.f32.mrf.mxu0
    %v603 = vadd.f32 0.0, %v602
    %v604 = vpop.f32.mrf.mxu0
    %605 = vmatprep.mubr.f32.mxu0 0.0
    %606 = vmatmul.mubr.f32.gmra.mxu0 %v476
    %v607 = vpop.f32.mrf.mxu0
    %v608 = vadd.f32 0.0, %v607
    %v609 = vpop.f32.mrf.mxu0
    %610 = vmatprep.mubr.f32.mxu0 0.0
    %611 = vmatmul.mubr.f32.gmra.mxu0 %v479
    %v612 = vpop.f32.mrf.mxu0
    %v613 = vadd.f32 0.0, %v612
    %v614 = vpop.f32.mrf.mxu0
    %615 = vmatprep.mubr.f32.mxu0 0.0
    %616 = vmatmul.mubr.f32.gmra.mxu0 %v482
    %v617 = vpop.f32.mrf.mxu0
    %v618 = vadd.f32 0.0, %v617
    %v619 = vpop.f32.mrf.mxu0
    %620 = vmatprep.mubr.f32.mxu0 0.0
    %621 = vmatmul.mubr.f32.gmra.mxu0 %v485
    %v622 = vpop.f32.mrf.mxu0
    %v623 = vadd.f32 0.0, %v622
    %v624 = vpop.f32.mrf.mxu0
    %625 = vmatprep.mubr.f32.mxu0 0.0
    %626 = vmatmul.mubr.f32.gmra.mxu0 %v488
    %v627 = vpop.f32.mrf.mxu0
    %v628 = vadd.f32 0.0, %v627
    %v629 = vpop.f32.mrf.mxu0
    %630 = vmatprep.mubr.f32.mxu0 0.0
    %631 = vmatmul.mubr.f32.gmra.mxu0 %v491
    %v632 = vpop.f32.mrf.mxu0
    %v633 = vadd.f32 0.0, %v632
    %v634 = vpop.f32.mrf.mxu0
    %635 = vmatprep.mubr.f32.mxu0 0.0
    %636 = vmatmul.mubr.f32.gmra.mxu0 %v494
    %v637 = vpop.f32.mrf.mxu0
    %v638 = vadd.f32 0.0, %v637
    %v639 = vpop.f32.mrf.mxu0
    %640 = vdwg.mxu0
    %v641 = vmul.f32 %v563, 0.125
    %v642 = vmul.f32 %v568, 0.125
    %v643 = vmul.f32 %v573, 0.125
    %v644 = vmul.f32 %v578, 0.125
    %v645 = vmul.f32 %v583, 0.125
    %v646 = vmul.f32 %v588, 0.125
    %v647 = vmul.f32 %v593, 0.125
    %v648 = vmul.f32 %v598, 0.125
    %v649 = vmul.f32 %v603, 0.125
    %v650 = vmul.f32 %v608, 0.125
    %v651 = vmul.f32 %v613, 0.125
    %v652 = vmul.f32 %v618, 0.125
    %v653 = vmul.f32 %v623, 0.125
    %v654 = vmul.f32 %v628, 0.125
    %v655 = vmul.f32 %v633, 0.125
    %v656 = vmul.f32 %v638, 0.125
    %v657 = vmul.f32 %v641, %v641
    %v658 = vmul.f32 %v642, %v642
    %v659 = vmul.f32 %v643, %v643
    %v660 = vmul.f32 %v644, %v644
    %v661 = vmul.f32 %v645, %v645
    %v662 = vmul.f32 %v646, %v646
    %v663 = vmul.f32 %v647, %v647
    %v664 = vmul.f32 %v648, %v648
    %v665 = vmul.f32 %v649, %v649
    %v666 = vmul.f32 %v650, %v650
    %v667 = vmul.f32 %v651, %v651
    %v668 = vmul.f32 %v652, %v652
    %v669 = vmul.f32 %v653, %v653
    %v670 = vmul.f32 %v654, %v654
    %v671 = vmul.f32 %v655, %v655
    %v672 = vmul.f32 %v656, %v656
    %v673 = vadd.f32 %v657, %v658
    %v674 = vadd.f32 %v673, %v659
    %v675 = vadd.f32 %v674, %v660
    %v676 = vadd.f32 %v675, %v661
    %v677 = vadd.f32 %v676, %v662
    %v678 = vadd.f32 %v677, %v663
    %v679 = vadd.f32 %v678, %v664
    %v680 = vadd.f32 %v679, %v665
    %v681 = vadd.f32 %v680, %v666
    %v682 = vadd.f32 %v681, %v667
    %v683 = vadd.f32 %v682, %v668
    %v684 = vadd.f32 %v683, %v669
    %v685 = vadd.f32 %v684, %v670
    %v686 = vadd.f32 %v685, %v671
    %v687 = vadd.f32 %v686, %v672
    %v688 = vrot.slane %v687, 4
    %v689 = vadd.f32 %v687, %v688
    %v690 = vrot.slane %v689, 2
    %v691 = vadd.f32 %v689, %v690
    %v692 = vrot.slane %v691, 1
    %v693 = vadd.f32 %v691, %v692
    %v694 = vmax.f32 %v693, 1e-16
    %v695 = vrsqrt.pop %v694
    %v696 = vmul.f32 %v270, %v270
    %697 = vadd.xlane.f32.xlu0 %v696
    %v698 = vpop.xlane.xlu0 %697
    %v699 = vmax.f32 %v698, 1e-16
    %v700 = vrsqrt.pop %v699
    %v701 = vmul.f32 %v641, %v695
    %v702 = vmul.f32 %v642, %v695
    %v703 = vmul.f32 %v643, %v695
    %v704 = vmul.f32 %v644, %v695
    %v705 = vmul.f32 %v645, %v695
    %v706 = vmul.f32 %v646, %v695
    %v707 = vmul.f32 %v647, %v695
    %v708 = vmul.f32 %v648, %v695
    %v709 = vmul.f32 %v649, %v695
    %v710 = vmul.f32 %v650, %v695
    %v711 = vmul.f32 %v651, %v695
    %v712 = vmul.f32 %v652, %v695
    %v713 = vmul.f32 %v653, %v695
    %v714 = vmul.f32 %v654, %v695
    %v715 = vmul.f32 %v655, %v695
    %v716 = vmul.f32 %v656, %v695
    %717 = vmatprep.subr.mxu0 0.0
    %718 = vmatpush1.msra.mxu0 %v716
    %719 = vmatprep.subr.mxu0 0.0
    %720 = vmatpush1.msra.mxu0 %v715
    %721 = vmatprep.subr.mxu0 0.0
    %722 = vmatpush1.msra.mxu0 %v714
    %723 = vmatprep.subr.mxu0 0.0
    %724 = vmatpush1.msra.mxu0 %v713
    %725 = vmatprep.subr.mxu0 0.0
    %726 = vmatpush1.msra.mxu0 %v712
    %727 = vmatprep.subr.mxu0 0.0
    %728 = vmatpush1.msra.mxu0 %v711
    %729 = vmatprep.subr.mxu0 0.0
    %730 = vmatpush1.msra.mxu0 %v710
    %731 = vmatprep.subr.mxu0 0.0
    %732 = vmatpush1.msra.mxu0 %v709
    %733 = vmatprep.subr.mxu0 0.0
    %734 = vmatpush1.msra.mxu0 %v708
    %735 = vmatprep.subr.mxu0 0.0
    %736 = vmatpush1.msra.mxu0 %v707
    %737 = vmatprep.subr.mxu0 0.0
    %738 = vmatpush1.msra.mxu0 %v706
    %739 = vmatprep.subr.mxu0 0.0
    %740 = vmatpush1.msra.mxu0 %v705
    %741 = vmatprep.subr.mxu0 0.0
    %742 = vmatpush1.msra.mxu0 %v704
    %743 = vmatprep.subr.mxu0 0.0
    %744 = vmatpush1.msra.mxu0 %v703
    %745 = vmatprep.subr.mxu0 0.0
    %746 = vmatpush1.msra.mxu0 %v702
    %747 = vmatprep.subr.mxu0 0.0
    %748 = vmatpush1.msra.mxu0 %v701
    %749 = vmatprep.subr.mxu0 0.0
    %750 = vmatpush2.msra.mxu0 0.0
    %751 = vmatprep.subr.mxu0 0.0
    %752 = vmatpush2.msra.mxu0 0.0
    %753 = vmatprep.subr.mxu0 0.0
    %754 = vmatpush2.msra.mxu0 0.0
    %755 = vmatprep.subr.mxu0 0.0
    %756 = vmatpush2.msra.mxu0 0.0
    %757 = vmatprep.subr.mxu0 0.0
    %758 = vmatpush2.msra.mxu0 0.0
    %759 = vmatprep.subr.mxu0 0.0
    %760 = vmatpush2.msra.mxu0 0.0
    %761 = vmatprep.subr.mxu0 0.0
    %762 = vmatpush2.msra.mxu0 0.0
    %763 = vmatprep.subr.mxu0 0.0
    %764 = vmatpush2.msra.mxu0 0.0
    %765 = vmatprep.subr.mxu0 0.0
    %766 = vmatpush2.msra.mxu0 0.0
    %767 = vmatprep.subr.mxu0 0.0
    %768 = vmatpush2.msra.mxu0 0.0
    %769 = vmatprep.subr.mxu0 0.0
    %770 = vmatpush2.msra.mxu0 0.0
    %771 = vmatprep.subr.mxu0 0.0
    %772 = vmatpush2.msra.mxu0 0.0
    %773 = vmatprep.subr.mxu0 0.0
    %774 = vmatpush2.msra.mxu0 0.0
    %775 = vmatprep.subr.mxu0 0.0
    %776 = vmatpush2.msra.mxu0 0.0
    %777 = vmatprep.subr.mxu0 0.0
    %778 = vmatpush2.msra.mxu0 0.0
    %779 = vmatprep.subr.mxu0 0.0
    %780 = vmatpush2.msra.mxu0 0.0
    %781 = vmatprep.mubr.f32.mxu0 0.0
    %782 = vmatmul.mubr.f32.gmra.mxu0 %v270
    %v783 = vpop.f32.mrf.mxu0
    %v784 = vadd.f32 0.0, %v783
    %v785 = vpop.f32.mrf.mxu0
    %786 = vdwg.mxu0
    %v787 = vmul.f32 %v784, %v700
    %v788 = vpack.c.bf16 %v787, %v787
    %789 = vst [vmem:[%s8] sm:$0xf] %v788
    %v790 = vsel %vm397, %v384, -1e+30
    %791 = vmax.xlane.f32.xlu0 %v790
    %v792 = vpop.xlane.xlu0 %791
    %v793 = vsub.f32 %v790, %v792
    %v794 = vmul.f32 %v793, 1.442695
    %v795 = vpow.pop %v794
    %v796 = vsel %vm397, %v795, 0.0
    %797 = vadd.xlane.f32.xlu0 %v796
    %v798 = vpop.xlane.xlu0 %797
    %v799 = vlog2.pop %v798
    %v800 = vmul.f32 %v799, 0.6931472
    %v801 = vadd.f32 %v800, %v792
    %v802 = vld [vmem:[%s2] sm:$0xff]
    %803 = vset.pattern.permute.xlu0 0
    %804 = vperm.xlu0 %803, %v802
    %v805 = vpop.permute.xlu0 %804
    %vm806 = vcmp.eq.s32.totalorder %v396, %v805
    %v807 = vsel %vm806, 1, 0
    %v808 = vcvt.s32.f32 %v807
    %v809 = vsub.f32 %v801, %v790
    %v810 = vmul.f32 %v808, %v809
    %v811 = vrot.slane %v810, 4
    %v812 = vadd.f32 %v810, %v811
    %v813 = vrot.slane %v812, 2
    %v814 = vadd.f32 %v812, %v813
    %v815 = vrot.slane %v814, 1
    %v816 = vadd.f32 %v814, %v815
    %817 = vadd.xlane.f32.xlu0 %v816
    %v818 = vpop.xlane.xlu0 %817
    %v819 = vmul.f32 %v818, 0.125
    %820 = vst [vmem:[%s9] sm:$0x1] %v819
    %v821 = vpack.c.bf16 %v392, %v389
    %v823 = vunpack.c.l.b16 %v821
    %v824 = vunpack.c.h.b16 %v821
    %v825 = vpack.c.b16 %v823, %v823
    %v826 = vpack.c.b16 %v824, %v824
    %s829 = scalar_lea.vmem %s7, 8
    %830 = vst [vmem:[%s829] sm:$0xf] %v825
    %831 = vst [vmem:[%s829 + $0x4] sm:$0xf] %v826
    %s832 = scalar_lea.vmem %s1, 8
    %v833 = vld [vmem:[%s832] sm:$0xff]
    %834 = vset.pattern.permute.xlu0 0
    %835 = vperm.xlu0 %834, %v833
    %v836 = vpop.permute.xlu0 %835
    %vm837 = vcmp.eq.s32.totalorder %v396, %v836
    %v838 = vsel %vm837, 1, 0
    %v839 = vcvt.s32.f32 %v838
    %840 = vxpose.xlu0.b32.start [1/16] %v271, 128
    %841 = vxpose.xlu0.b32.cont [2/16] 0.0, 128
    %842 = vxpose.xlu0.b32.cont [3/16] 0.0, 128
    %843 = vxpose.xlu0.b32.cont [4/16] 0.0, 128
    %844 = vxpose.xlu0.b32.cont [5/16] 0.0, 128
    %845 = vxpose.xlu0.b32.cont [6/16] 0.0, 128
    %846 = vxpose.xlu0.b32.cont [7/16] 0.0, 128
    %847 = vxpose.xlu0.b32.cont [8/16] 0.0, 128
    %848 = vxpose.xlu0.b32.cont [9/16] 0.0, 128
    %849 = vxpose.xlu0.b32.cont [10/16] 0.0, 128
    %850 = vxpose.xlu0.b32.cont [11/16] 0.0, 128
    %851 = vxpose.xlu0.b32.cont [12/16] 0.0, 128
    %852 = vxpose.xlu0.b32.cont [13/16] 0.0, 128
    %853 = vxpose.xlu0.b32.cont [14/16] 0.0, 128
    %854 = vxpose.xlu0.b32.cont [15/16] 0.0, 128
    %855 = vxpose.xlu0.b32.end [16/16] 0.0, 128
    %v856 = vpop.trf.xlu0
    %v857 = vpop.trf.xlu0
    %v858 = vpop.trf.xlu0
    %v859 = vpop.trf.xlu0
    %v860 = vpop.trf.xlu0
    %v861 = vpop.trf.xlu0
    %v862 = vpop.trf.xlu0
    %v863 = vpop.trf.xlu0
    %v864 = vpop.trf.xlu0
    %v865 = vpop.trf.xlu0
    %v866 = vpop.trf.xlu0
    %v867 = vpop.trf.xlu0
    %v868 = vpop.trf.xlu0
    %v869 = vpop.trf.xlu0
    %v870 = vpop.trf.xlu0
    %v871 = vpop.trf.xlu0
    %v873 = vsel %vm447, %v856, 0
    %v876 = vsel %vm447, %v857, 0
    %v879 = vsel %vm447, %v858, 0
    %v882 = vsel %vm447, %v859, 0
    %v885 = vsel %vm447, %v860, 0
    %v888 = vsel %vm447, %v861, 0
    %v891 = vsel %vm447, %v862, 0
    %v894 = vsel %vm447, %v863, 0
    %v897 = vsel %vm447, %v864, 0
    %v900 = vsel %vm447, %v865, 0
    %v903 = vsel %vm447, %v866, 0
    %v906 = vsel %vm447, %v867, 0
    %v909 = vsel %vm447, %v868, 0
    %v912 = vsel %vm447, %v869, 0
    %v915 = vsel %vm447, %v870, 0
    %v918 = vsel %vm447, %v871, 0
    %920 = vmatprep.subr.mxu0 0.0
    %921 = vmatpush1.msra.mxu0 0.0
    %922 = vmatprep.subr.mxu0 0.0
    %923 = vmatpush1.msra.mxu0 0.0
    %924 = vmatprep.subr.mxu0 0.0
    %925 = vmatpush1.msra.mxu0 0.0
    %926 = vmatprep.subr.mxu0 0.0
    %927 = vmatpush1.msra.mxu0 0.0
    %928 = vmatprep.subr.mxu0 0.0
    %929 = vmatpush1.msra.mxu0 0.0
    %930 = vmatprep.subr.mxu0 0.0
    %931 = vmatpush1.msra.mxu0 0.0
    %932 = vmatprep.subr.mxu0 0.0
    %933 = vmatpush1.msra.mxu0 0.0
    %934 = vmatprep.subr.mxu0 0.0
    %935 = vmatpush1.msra.mxu0 0.0
    %936 = vmatprep.subr.mxu0 0.0
    %937 = vmatpush1.msra.mxu0 0.0
    %938 = vmatprep.subr.mxu0 0.0
    %939 = vmatpush1.msra.mxu0 0.0
    %940 = vmatprep.subr.mxu0 0.0
    %941 = vmatpush1.msra.mxu0 0.0
    %942 = vmatprep.subr.mxu0 0.0
    %943 = vmatpush1.msra.mxu0 0.0
    %944 = vmatprep.subr.mxu0 0.0
    %945 = vmatpush1.msra.mxu0 0.0
    %946 = vmatprep.subr.mxu0 0.0
    %947 = vmatpush1.msra.mxu0 0.0
    %948 = vmatprep.subr.mxu0 0.0
    %949 = vmatpush1.msra.mxu0 0.0
    %950 = vmatprep.subr.mxu0 0.0
    %951 = vmatpush1.msra.mxu0 %v839
    %952 = vmatprep.subr.mxu0 0.0
    %953 = vmatpush2.msra.mxu0 0.0
    %954 = vmatprep.subr.mxu0 0.0
    %955 = vmatpush2.msra.mxu0 0.0
    %956 = vmatprep.subr.mxu0 0.0
    %957 = vmatpush2.msra.mxu0 0.0
    %958 = vmatprep.subr.mxu0 0.0
    %959 = vmatpush2.msra.mxu0 0.0
    %960 = vmatprep.subr.mxu0 0.0
    %961 = vmatpush2.msra.mxu0 0.0
    %962 = vmatprep.subr.mxu0 0.0
    %963 = vmatpush2.msra.mxu0 0.0
    %964 = vmatprep.subr.mxu0 0.0
    %965 = vmatpush2.msra.mxu0 0.0
    %966 = vmatprep.subr.mxu0 0.0
    %967 = vmatpush2.msra.mxu0 0.0
    %968 = vmatprep.subr.mxu0 0.0
    %969 = vmatpush2.msra.mxu0 0.0
    %970 = vmatprep.subr.mxu0 0.0
    %971 = vmatpush2.msra.mxu0 0.0
    %972 = vmatprep.subr.mxu0 0.0
    %973 = vmatpush2.msra.mxu0 0.0
    %974 = vmatprep.subr.mxu0 0.0
    %975 = vmatpush2.msra.mxu0 0.0
    %976 = vmatprep.subr.mxu0 0.0
    %977 = vmatpush2.msra.mxu0 0.0
    %978 = vmatprep.subr.mxu0 0.0
    %979 = vmatpush2.msra.mxu0 0.0
    %980 = vmatprep.subr.mxu0 0.0
    %981 = vmatpush2.msra.mxu0 0.0
    %982 = vmatprep.subr.mxu0 0.0
    %983 = vmatpush2.msra.mxu0 0.0
    %984 = vmatprep.mubr.f32.mxu0 0.0
    %985 = vmatmul.mubr.f32.gmra.mxu0 %v873
    %v986 = vpop.f32.mrf.mxu0
    %v987 = vadd.f32 0.0, %v986
    %v988 = vpop.f32.mrf.mxu0
    %989 = vmatprep.mubr.f32.mxu0 0.0
    %990 = vmatmul.mubr.f32.gmra.mxu0 %v876
    %v991 = vpop.f32.mrf.mxu0
    %v992 = vadd.f32 0.0, %v991
    %v993 = vpop.f32.mrf.mxu0
    %994 = vmatprep.mubr.f32.mxu0 0.0
    %995 = vmatmul.mubr.f32.gmra.mxu0 %v879
    %v996 = vpop.f32.mrf.mxu0
    %v997 = vadd.f32 0.0, %v996
    %v998 = vpop.f32.mrf.mxu0
    %999 = vmatprep.mubr.f32.mxu0 0.0
    %1000 = vmatmul.mubr.f32.gmra.mxu0 %v882
    %v1001 = vpop.f32.mrf.mxu0
    %v1002 = vadd.f32 0.0, %v1001
    %v1003 = vpop.f32.mrf.mxu0
    %1004 = vmatprep.mubr.f32.mxu0 0.0
    %1005 = vmatmul.mubr.f32.gmra.mxu0 %v885
    %v1006 = vpop.f32.mrf.mxu0
    %v1007 = vadd.f32 0.0, %v1006
    %v1008 = vpop.f32.mrf.mxu0
    %1009 = vmatprep.mubr.f32.mxu0 0.0
    %1010 = vmatmul.mubr.f32.gmra.mxu0 %v888
    %v1011 = vpop.f32.mrf.mxu0
    %v1012 = vadd.f32 0.0, %v1011
    %v1013 = vpop.f32.mrf.mxu0
    %1014 = vmatprep.mubr.f32.mxu0 0.0
    %1015 = vmatmul.mubr.f32.gmra.mxu0 %v891
    %v1016 = vpop.f32.mrf.mxu0
    %v1017 = vadd.f32 0.0, %v1016
    %v1018 = vpop.f32.mrf.mxu0
    %1019 = vmatprep.mubr.f32.mxu0 0.0
    %1020 = vmatmul.mubr.f32.gmra.mxu0 %v894
    %v1021 = vpop.f32.mrf.mxu0
    %v1022 = vadd.f32 0.0, %v1021
    %v1023 = vpop.f32.mrf.mxu0
    %1024 = vmatprep.mubr.f32.mxu0 0.0
    %1025 = vmatmul.mubr.f32.gmra.mxu0 %v897
    %v1026 = vpop.f32.mrf.mxu0
    %v1027 = vadd.f32 0.0, %v1026
    %v1028 = vpop.f32.mrf.mxu0
    %1029 = vmatprep.mubr.f32.mxu0 0.0
    %1030 = vmatmul.mubr.f32.gmra.mxu0 %v900
    %v1031 = vpop.f32.mrf.mxu0
    %v1032 = vadd.f32 0.0, %v1031
    %v1033 = vpop.f32.mrf.mxu0
    %1034 = vmatprep.mubr.f32.mxu0 0.0
    %1035 = vmatmul.mubr.f32.gmra.mxu0 %v903
    %v1036 = vpop.f32.mrf.mxu0
    %v1037 = vadd.f32 0.0, %v1036
    %v1038 = vpop.f32.mrf.mxu0
    %1039 = vmatprep.mubr.f32.mxu0 0.0
    %1040 = vmatmul.mubr.f32.gmra.mxu0 %v906
    %v1041 = vpop.f32.mrf.mxu0
    %v1042 = vadd.f32 0.0, %v1041
    %v1043 = vpop.f32.mrf.mxu0
    %1044 = vmatprep.mubr.f32.mxu0 0.0
    %1045 = vmatmul.mubr.f32.gmra.mxu0 %v909
    %v1046 = vpop.f32.mrf.mxu0
    %v1047 = vadd.f32 0.0, %v1046
    %v1048 = vpop.f32.mrf.mxu0
    %1049 = vmatprep.mubr.f32.mxu0 0.0
    %1050 = vmatmul.mubr.f32.gmra.mxu0 %v912
    %v1051 = vpop.f32.mrf.mxu0
    %v1052 = vadd.f32 0.0, %v1051
    %v1053 = vpop.f32.mrf.mxu0
    %1054 = vmatprep.mubr.f32.mxu0 0.0
    %1055 = vmatmul.mubr.f32.gmra.mxu0 %v915
    %v1056 = vpop.f32.mrf.mxu0
    %v1057 = vadd.f32 0.0, %v1056
    %v1058 = vpop.f32.mrf.mxu0
    %1059 = vmatprep.mubr.f32.mxu0 0.0
    %1060 = vmatmul.mubr.f32.gmra.mxu0 %v918
    %v1061 = vpop.f32.mrf.mxu0
    %v1062 = vadd.f32 0.0, %v1061
    %v1063 = vpop.f32.mrf.mxu0
    %1064 = vdwg.mxu0
    %v1065 = vmul.f32 %v987, 0.125
    %v1066 = vmul.f32 %v992, 0.125
    %v1067 = vmul.f32 %v997, 0.125
    %v1068 = vmul.f32 %v1002, 0.125
    %v1069 = vmul.f32 %v1007, 0.125
    %v1070 = vmul.f32 %v1012, 0.125
    %v1071 = vmul.f32 %v1017, 0.125
    %v1072 = vmul.f32 %v1022, 0.125
    %v1073 = vmul.f32 %v1027, 0.125
    %v1074 = vmul.f32 %v1032, 0.125
    %v1075 = vmul.f32 %v1037, 0.125
    %v1076 = vmul.f32 %v1042, 0.125
    %v1077 = vmul.f32 %v1047, 0.125
    %v1078 = vmul.f32 %v1052, 0.125
    %v1079 = vmul.f32 %v1057, 0.125
    %v1080 = vmul.f32 %v1062, 0.125
    %v1081 = vmul.f32 %v1065, %v1065
    %v1082 = vmul.f32 %v1066, %v1066
    %v1083 = vmul.f32 %v1067, %v1067
    %v1084 = vmul.f32 %v1068, %v1068
    %v1085 = vmul.f32 %v1069, %v1069
    %v1086 = vmul.f32 %v1070, %v1070
    %v1087 = vmul.f32 %v1071, %v1071
    %v1088 = vmul.f32 %v1072, %v1072
    %v1089 = vmul.f32 %v1073, %v1073
    %v1090 = vmul.f32 %v1074, %v1074
    %v1091 = vmul.f32 %v1075, %v1075
    %v1092 = vmul.f32 %v1076, %v1076
    %v1093 = vmul.f32 %v1077, %v1077
    %v1094 = vmul.f32 %v1078, %v1078
    %v1095 = vmul.f32 %v1079, %v1079
    %v1096 = vmul.f32 %v1080, %v1080
    %v1097 = vadd.f32 %v1081, %v1082
    %v1098 = vadd.f32 %v1097, %v1083
    %v1099 = vadd.f32 %v1098, %v1084
    %v1100 = vadd.f32 %v1099, %v1085
    %v1101 = vadd.f32 %v1100, %v1086
    %v1102 = vadd.f32 %v1101, %v1087
    %v1103 = vadd.f32 %v1102, %v1088
    %v1104 = vadd.f32 %v1103, %v1089
    %v1105 = vadd.f32 %v1104, %v1090
    %v1106 = vadd.f32 %v1105, %v1091
    %v1107 = vadd.f32 %v1106, %v1092
    %v1108 = vadd.f32 %v1107, %v1093
    %v1109 = vadd.f32 %v1108, %v1094
    %v1110 = vadd.f32 %v1109, %v1095
    %v1111 = vadd.f32 %v1110, %v1096
    %v1112 = vrot.slane %v1111, 4
    %v1113 = vadd.f32 %v1111, %v1112
    %v1114 = vrot.slane %v1113, 2
    %v1115 = vadd.f32 %v1113, %v1114
    %v1116 = vrot.slane %v1115, 1
    %v1117 = vadd.f32 %v1115, %v1116
    %v1118 = vmax.f32 %v1117, 1e-16
    %v1119 = vrsqrt.pop %v1118
    %v1120 = vmul.f32 %v272, %v272
    %1121 = vadd.xlane.f32.xlu0 %v1120
    %v1122 = vpop.xlane.xlu0 %1121
    %v1123 = vmax.f32 %v1122, 1e-16
    %v1124 = vrsqrt.pop %v1123
    %v1125 = vmul.f32 %v1065, %v1119
    %v1126 = vmul.f32 %v1066, %v1119
    %v1127 = vmul.f32 %v1067, %v1119
    %v1128 = vmul.f32 %v1068, %v1119
    %v1129 = vmul.f32 %v1069, %v1119
    %v1130 = vmul.f32 %v1070, %v1119
    %v1131 = vmul.f32 %v1071, %v1119
    %v1132 = vmul.f32 %v1072, %v1119
    %v1133 = vmul.f32 %v1073, %v1119
    %v1134 = vmul.f32 %v1074, %v1119
    %v1135 = vmul.f32 %v1075, %v1119
    %v1136 = vmul.f32 %v1076, %v1119
    %v1137 = vmul.f32 %v1077, %v1119
    %v1138 = vmul.f32 %v1078, %v1119
    %v1139 = vmul.f32 %v1079, %v1119
    %v1140 = vmul.f32 %v1080, %v1119
    %1141 = vmatprep.subr.mxu0 0.0
    %1142 = vmatpush1.msra.mxu0 %v1140
    %1143 = vmatprep.subr.mxu0 0.0
    %1144 = vmatpush1.msra.mxu0 %v1139
    %1145 = vmatprep.subr.mxu0 0.0
    %1146 = vmatpush1.msra.mxu0 %v1138
    %1147 = vmatprep.subr.mxu0 0.0
    %1148 = vmatpush1.msra.mxu0 %v1137
    %1149 = vmatprep.subr.mxu0 0.0
    %1150 = vmatpush1.msra.mxu0 %v1136
    %1151 = vmatprep.subr.mxu0 0.0
    %1152 = vmatpush1.msra.mxu0 %v1135
    %1153 = vmatprep.subr.mxu0 0.0
    %1154 = vmatpush1.msra.mxu0 %v1134
    %1155 = vmatprep.subr.mxu0 0.0
    %1156 = vmatpush1.msra.mxu0 %v1133
    %1157 = vmatprep.subr.mxu0 0.0
    %1158 = vmatpush1.msra.mxu0 %v1132
    %1159 = vmatprep.subr.mxu0 0.0
    %1160 = vmatpush1.msra.mxu0 %v1131
    %1161 = vmatprep.subr.mxu0 0.0
    %1162 = vmatpush1.msra.mxu0 %v1130
    %1163 = vmatprep.subr.mxu0 0.0
    %1164 = vmatpush1.msra.mxu0 %v1129
    %1165 = vmatprep.subr.mxu0 0.0
    %1166 = vmatpush1.msra.mxu0 %v1128
    %1167 = vmatprep.subr.mxu0 0.0
    %1168 = vmatpush1.msra.mxu0 %v1127
    %1169 = vmatprep.subr.mxu0 0.0
    %1170 = vmatpush1.msra.mxu0 %v1126
    %1171 = vmatprep.subr.mxu0 0.0
    %1172 = vmatpush1.msra.mxu0 %v1125
    %1173 = vmatprep.subr.mxu0 0.0
    %1174 = vmatpush2.msra.mxu0 0.0
    %1175 = vmatprep.subr.mxu0 0.0
    %1176 = vmatpush2.msra.mxu0 0.0
    %1177 = vmatprep.subr.mxu0 0.0
    %1178 = vmatpush2.msra.mxu0 0.0
    %1179 = vmatprep.subr.mxu0 0.0
    %1180 = vmatpush2.msra.mxu0 0.0
    %1181 = vmatprep.subr.mxu0 0.0
    %1182 = vmatpush2.msra.mxu0 0.0
    %1183 = vmatprep.subr.mxu0 0.0
    %1184 = vmatpush2.msra.mxu0 0.0
    %1185 = vmatprep.subr.mxu0 0.0
    %1186 = vmatpush2.msra.mxu0 0.0
    %1187 = vmatprep.subr.mxu0 0.0
    %1188 = vmatpush2.msra.mxu0 0.0
    %1189 = vmatprep.subr.mxu0 0.0
    %1190 = vmatpush2.msra.mxu0 0.0
    %1191 = vmatprep.subr.mxu0 0.0
    %1192 = vmatpush2.msra.mxu0 0.0
    %1193 = vmatprep.subr.mxu0 0.0
    %1194 = vmatpush2.msra.mxu0 0.0
    %1195 = vmatprep.subr.mxu0 0.0
    %1196 = vmatpush2.msra.mxu0 0.0
    %1197 = vmatprep.subr.mxu0 0.0
    %1198 = vmatpush2.msra.mxu0 0.0
    %1199 = vmatprep.subr.mxu0 0.0
    %1200 = vmatpush2.msra.mxu0 0.0
    %1201 = vmatprep.subr.mxu0 0.0
    %1202 = vmatpush2.msra.mxu0 0.0
    %1203 = vmatprep.subr.mxu0 0.0
    %1204 = vmatpush2.msra.mxu0 0.0
    %1205 = vmatprep.mubr.f32.mxu0 0.0
    %1206 = vmatmul.mubr.f32.gmra.mxu0 %v272
    %v1207 = vpop.f32.mrf.mxu0
    %v1208 = vadd.f32 0.0, %v1207
    %v1209 = vpop.f32.mrf.mxu0
    %1210 = vdwg.mxu0
    %v1211 = vmul.f32 %v1208, %v1124
    %v1212 = vpack.c.bf16 %v1211, %v1211
    %s1213 = scalar_lea.vmem %s8, 4
    %1214 = vst [vmem:[%s1213] sm:$0xf] %v1212
    %v1215 = vsel %vm397, %v392, -1e+30
    %1216 = vmax.xlane.f32.xlu0 %v1215
    %v1217 = vpop.xlane.xlu0 %1216
    %v1218 = vsub.f32 %v1215, %v1217
    %v1219 = vmul.f32 %v1218, 1.442695
    %v1220 = vpow.pop %v1219
    %v1221 = vsel %vm397, %v1220, 0.0
    %1222 = vadd.xlane.f32.xlu0 %v1221
    %v1223 = vpop.xlane.xlu0 %1222
    %v1224 = vlog2.pop %v1223
    %v1225 = vmul.f32 %v1224, 0.6931472
    %v1226 = vadd.f32 %v1225, %v1217
    %s1227 = scalar_lea.vmem %s2, 8
    %v1228 = vld [vmem:[%s1227] sm:$0xff]
    %1229 = vset.pattern.permute.xlu0 0
    %1230 = vperm.xlu0 %1229, %v1228
    %v1231 = vpop.permute.xlu0 %1230
    %vm1232 = vcmp.eq.s32.totalorder %v396, %v1231
    %v1233 = vsel %vm1232, 1, 0
    %v1234 = vcvt.s32.f32 %v1233
    %v1235 = vsub.f32 %v1226, %v1215
    %v1236 = vmul.f32 %v1234, %v1235
    %v1237 = vrot.slane %v1236, 4
    %v1238 = vadd.f32 %v1236, %v1237
    %v1239 = vrot.slane %v1238, 2
    %v1240 = vadd.f32 %v1238, %v1239
    %v1241 = vrot.slane %v1240, 1
    %v1242 = vadd.f32 %v1240, %v1241
    %1243 = vadd.xlane.f32.xlu0 %v1242
    %v1244 = vpop.xlane.xlu0 %1243
    %v1245 = vmul.f32 %v1244, 0.125
    %s1246 = scalar_lea.vmem %s9, 1
    %1247 = vst [vmem:[%s1246] sm:$0x1] %v1245
  $region37: #{_cls_forward.1} parent=0 // pred_fallthru
    _
  // Predicated region
  $region38: #{_cls_forward.1} parent=0 // pred_check
    _
  $region39: #{_cls_forward.1} parent=0 // pred_check_branch
    %1249 = sbr.rel (0) target = $region41
  $region40: #{_cls_forward.1} parent=0 // pred_region
    _
  $region41: #{_cls_forward.1} parent=0 // pred_fallthru
    _
  // Predicated region
  $region42: #{_cls_forward.1} parent=0 // pred_check
    _
  $region43: #{_cls_forward.1} parent=0 // pred_check_branch
    %1251 = sbr.rel (0) target = $region45
  $region44: #{_cls_forward.1} parent=0 // pred_region
    _
  $region45: #{_cls_forward.1} parent=0 // pred_fallthru
    _
  // Predicated region
  $region46: #{_cls_forward.1} parent=0 // pred_check
    _
  $region47: #{_cls_forward.1} parent=0 // pred_check_branch
    %1253 = sbr.rel (0) target = $region49
  $region48: #{_cls_forward.1} parent=0 // pred_region
    _
  $region49: #{_cls_forward.1} parent=0 // pred_fallthru
    _
  // Predicated region
  $region50: #{_cls_forward.1} parent=0 // pred_check
    _
  $region51: #{_cls_forward.1} parent=0 // pred_check_branch
    %1255 = sbr.rel (0) target = $region53
  $region52: #{_cls_forward.1} parent=0 // pred_region
    _
  $region53: #{_cls_forward.1} parent=0 // pred_fallthru
    _
  // Predicated region
  $region54: #{_cls_forward.1} parent=0 // pred_check
    _
  $region55: #{_cls_forward.1} parent=0 // pred_check_branch
    %1257 = sbr.rel (0) target = $region57
  $region56: #{_cls_forward.1} parent=0 // pred_region
    _
  $region57: #{_cls_forward.1} parent=0 // pred_fallthru
    _
  // Predicated region
  $region58: #{_cls_forward.1} parent=0 // pred_check
    _
  $region59: #{_cls_forward.1} parent=0 // pred_check_branch
    %1259 = sbr.rel (0) target = $region61
  $region60: #{_cls_forward.1} parent=0 // pred_region
    _
  $region61: #{_cls_forward.1} parent=0 // pred_fallthru
    _

</llo_original>
